<compile_context>
chip_gen: v6e
topology: v6e:2x2x1
jax: 0.10.0
libtpu: 0.0.40
codegen_flags: <defaults>
</compile_context>

<pallas_src>
import functools

import numpy as np
import jax
import jax.numpy as jnp
from jax import lax
from jax.experimental import pallas as pl
from jax.experimental.pallas import tpu as pltpu

LEAKY_SLOPE = 0.01   # nn.LeakyReLU default negative_slope
BN_EPS = 1e-5
_APRON = 128         # lane-aligned zero apron -> all lane concat operands are
                     # multiples of 128 (or last), keeping the concat vreg-aligned


# ---------------------------------------------------------------------------
# In-kernel helpers
# ---------------------------------------------------------------------------

def _leaky(x, slope):
    return jnp.where(x > 0, x, slope * x)


def _conv3x3_flat(x, wpack, H, W):
    """3x3 'same' convolution on a channel-major, spatially-flattened plane.

    x     : (Cin, H*W)    flat spatial index p = y*W + x on the lane axis
    wpack : (Cout, 9*Cin) tap-major / input-channel-minor packed weights
    returns (Cout, H*W) float32

    The 9 taps are shifted slices of [0 .. x .. 0] (flat zero apron); left/right
    image borders are fixed with iota column masks (top/bottom borders fall into
    the zero apron automatically).  The taps are stacked along sublanes and
    contracted with a single MXU GEMM of depth K = 9*Cin.
    """
    C, L = x.shape
    zeros = jnp.zeros((C, _APRON), x.dtype)
    xp = jnp.concatenate([zeros, x, zeros], axis=1)            # (C, L + 2*APRON)

    col = lax.broadcasted_iota(jnp.int32, (1, L), 1) % W
    ok_l = (col >= 1).astype(x.dtype)        # tap column dx = -1 valid
    ok_r = (col <= W - 2).astype(x.dtype)    # tap column dx = +1 valid

    taps = []
    for dy in (-1, 0, 1):
        for dx in (-1, 0, 1):
            start = _APRON + dy * W + dx
            t = xp[:, start:start + L]                         # (C, L)
            if dx == -1:
                t = t * ok_l
            elif dx == 1:
                t = t * ok_r
            taps.append(t)
    rhs = jnp.concatenate(taps, axis=0)                        # (9*Cin, L)
    return jnp.dot(wpack, rhs, preferred_element_type=jnp.float32)


# ---------------------------------------------------------------------------
# Fused up1 kernel (one batch element per grid step)
# ---------------------------------------------------------------------------

def _up1_kernel(x1_ref, x2_ref, x3_ref, pool_ref, tile_ref, up_ref,
                wa_ref, ba_ref, wr_ref, br_ref,
                w1_ref, b1_ref, w2_ref, b2_ref,
                o_ref, *, H1, W1, H2, W2, slope):
    f32 = jnp.float32
    x1 = x1_ref[0]                                             # (in_ch, H1*W1)
    # skip concat done in VMEM (no HBM concat of x2/x3)
    skip = jnp.concatenate([x2_ref[0], x3_ref[0]], axis=0)     # (Ca, H2*W2)

    # --- attention_gate(cat([x2, x3]), x1) --------------------------------
    # AvgPool(ks) as a matmul with a pooling matrix, 1x1 conv with BN folded
    # into the weights, ReLU, then the view/repeat broadcast as a matmul with
    # a 0/1 tiling matrix, multiplied with the skip features.
    pooled = jnp.dot(x1, pool_ref[...], preferred_element_type=f32)   # (in_ch, hp*wp)
    z = jnp.dot(wa_ref[...], pooled, preferred_element_type=f32) + ba_ref[...]
    z = jnp.maximum(z, 0.0)                                           # ReLU
    att = jnp.dot(z, tile_ref[...], preferred_element_type=f32) * skip  # (Ca, H2*W2)

    # --- reduce_dim(x1): 3x3 conv + bias, bilinear x2 (align_corners=True) --
    r = _conv3x3_flat(x1, wr_ref[...], H1, W1) + br_ref[...]          # (Cr, H1*W1)
    r_up = jnp.dot(r, up_ref[...], preferred_element_type=f32)        # (Cr, H2*W2)

    # --- cat + double_conv (BN folded into weights) -------------------------
    h = jnp.concatenate([r_up, att], axis=0)                          # (in_ch, H2*W2)
    h = _leaky(_conv3x3_flat(h, w1_ref[...], H2, W2) + b1_ref[...], slope)
    # Dropout(0.2) is identity in eval mode.
    y = _leaky(_conv3x3_flat(h, w2_ref[...], H2, W2) + b2_ref[...], slope)
    o_ref[0] = y.astype(o_ref.dtype)


def _up1_pallas(x1f, x2f, x3f, consts, *, H1, W1, H2, W2):
    (P, T, U, wa, ba, wr, br, w1, b1, w2, b2) = consts
    N, in_ch, L1 = x1f.shape
    _, c2, L2 = x2f.shape
    _, c3, _ = x3f.shape
    C2 = w2.shape[0]

    def const_spec(a):
        shape = a.shape
        return pl.BlockSpec(shape, lambda n, _s=len(shape): (0,) * _s)

    kern = functools.partial(_up1_kernel, H1=H1, W1=W1, H2=H2, W2=W2,
                             slope=LEAKY_SLOPE)

    return pl.pallas_call(
        kern,
        out_shape=jax.ShapeDtypeStruct((N, C2, L2), jnp.float32),
        grid_spec=pltpu.PrefetchScalarGridSpec(
            num_scalar_prefetch=0,
            grid=(N,),
            in_specs=[
                pl.BlockSpec((1, in_ch, L1), lambda n: (n, 0, 0)),
                pl.BlockSpec((1, c2, L2), lambda n: (n, 0, 0)),
                pl.BlockSpec((1, c3, L2), lambda n: (n, 0, 0)),
                const_spec(P), const_spec(T), const_spec(U),
                const_spec(wa), const_spec(ba),
                const_spec(wr), const_spec(br),
                const_spec(w1), const_spec(b1),
                const_spec(w2), const_spec(b2),
            ],
            out_specs=pl.BlockSpec((1, C2, L2), lambda n: (n, 0, 0)),
        ),
        compiler_params=pltpu.CompilerParams(
            dimension_semantics=("parallel",),
            vmem_limit_bytes=32 * 1024 * 1024),
    )(x1f, x2f, x3f, P, T, U, wa, ba, wr, br, w1, b1, w2, b2)


# ---------------------------------------------------------------------------
# Glue: weight packing / BN folding / constant matrices
# ---------------------------------------------------------------------------

def _pack_conv3x3(w_oihw):
    """OIHW (Cout, Cin, 3, 3) -> (Cout, 9*Cin), tap-major / channel-minor."""
    co, ci, kh, kw = w_oihw.shape
    return jnp.transpose(w_oihw, (0, 2, 3, 1)).reshape(co, kh * kw * ci)


def _fold_pack_conv_bn(w_oihw, conv_b, gamma, beta, rm, rv, eps=BN_EPS):
    scale = gamma / jnp.sqrt(rv + eps)                         # (Cout,)
    w = w_oihw * scale[:, None, None, None]
    bias = beta + (conv_b - rm) * scale
    return (_pack_conv3x3(w).astype(jnp.float32),
            bias.reshape(-1, 1).astype(jnp.float32))


def _interp_matrix_np(n_in, n_out):
    """Bilinear interpolation matrix (n_out, n_in), align_corners=True."""
    src = np.arange(n_out, dtype=np.float64) * (n_in - 1) / (n_out - 1)
    lo = np.clip(np.floor(src).astype(np.int64), 0, n_in - 2)
    fr = (src - lo).astype(np.float32)
    m = np.zeros((n_out, n_in), np.float32)
    m[np.arange(n_out), lo] += 1.0 - fr
    m[np.arange(n_out), lo + 1] += fr
    return m


def up1_forward(x3, x2, x1, params, kernel_size=2, eps=BN_EPS):
    """Forward of up1 (attention_up=True path). Inputs/outputs are NCHW."""
    N, in_ch, H1, W1 = x1.shape
    _, cs2, H2, W2 = x2.shape
    _, cs3, _, _ = x3.shape
    ks = kernel_size
    hp, wp = H1 // ks, W1 // ks
    L1, L2, Lp = H1 * W1, H2 * W2, hp * wp
    # attention_gate's view/repeat math requires (H1/ks)^2 == H2 (and same in W)
    assert hp * hp == H2 and wp * wp == W2

    # Flatten the spatial dims onto the lane axis (channel-major, no transpose,
    # reshape of contiguous NCHW is free in XLA).
    x1f = x1.reshape(N, in_ch, L1)
    x2f = x2.reshape(N, cs2, L2)
    x3f = x3.reshape(N, cs3, L2)

    # --- host-side constant matrices (trace-time numpy, tiny) ----------------
    # AvgPool2d(ks) as an (L1, Lp) matrix.
    yy, xx = np.meshgrid(np.arange(H1), np.arange(W1), indexing="ij")
    p_idx = ((yy // ks) * wp + (xx // ks)).reshape(-1)
    P = np.zeros((L1, Lp), np.float32)
    P[np.arange(L1), p_idx] = 1.0 / (ks * ks)

    # view/repeat broadcast of attention_gate as a 0/1 (Lp, L2) matrix.
    iy, jx = np.meshgrid(np.arange(H2), np.arange(W2), indexing="ij")
    t_idx = ((iy % hp) * wp + (jx % wp)).reshape(-1)
    T = np.zeros((Lp, L2), np.float32)
    T[t_idx, np.arange(L2)] = 1.0

    # bilinear x2 upsample (align_corners=True) as an (L1, L2) matrix.
    My = _interp_matrix_np(H1, H2)                              # (H2, H1)
    Mx = _interp_matrix_np(W1, W2)                              # (W2, W1)
    U = np.einsum("oh,pw->hwop", My, Mx).reshape(L1, L2).astype(np.float32)

    P, T, U = jnp.asarray(P), jnp.asarray(T), jnp.asarray(U)

    # --- fold BatchNorms into the conv weights -------------------------------
    sa = params["att_g"] / jnp.sqrt(params["att_rv"] + eps)
    wa = (params["att_w"][:, :, 0, 0] * sa[:, None]).astype(jnp.float32)   # (Ca, in_ch)
    ba = (params["att_be"] + (params["att_b"] - params["att_rm"]) * sa
          ).reshape(-1, 1).astype(jnp.float32)

    wr = _pack_conv3x3(params["rd_w"]).astype(jnp.float32)                 # (Cr, 9*in_ch)
    br = params["rd_b"].reshape(-1, 1).astype(jnp.float32)

    w1, b1 = _fold_pack_conv_bn(params["c1_w"], params["c1_b"],
                                params["bn1_g"], params["bn1_be"],
                                params["bn1_rm"], params["bn1_rv"], eps)
    w2, b2 = _fold_pack_conv_bn(params["c2_w"], params["c2_b"],
                                params["bn2_g"], params["bn2_be"],
                                params["bn2_rm"], params["bn2_rv"], eps)

    y = _up1_pallas(x1f, x2f, x3f,
                    (P, T, U, wa, ba, wr, br, w1, b1, w2, b2),
                    H1=H1, W1=W1, H2=H2, W2=W2)                 # (N, C2, L2)
    return y.reshape(N, w2.shape[0], H2, W2)                    # NCHW out


# ---------------------------------------------------------------------------
# Pure-JAX reference (lax convs) for correctness checking
# ---------------------------------------------------------------------------

def _ref_up1_forward(x3, x2, x1, params, kernel_size=2, eps=BN_EPS):
    def conv(x, w, b, pad):
        y = lax.conv_general_dilated(
            x, w, window_strides=(1, 1), padding=((pad, pad), (pad, pad)),
            dimension_numbers=("NCHW", "OIHW", "NCHW"))
        return y + b[None, :, None, None]

    def bn(x, g, be, rm, rv):
        return ((x - rm[None, :, None, None])
                / jnp.sqrt(rv[None, :, None, None] + eps)
                * g[None, :, None, None] + be[None, :, None, None])

    def leaky(x):
        return jnp.where(x > 0, x, LEAKY_SLOPE * x)

    # attention_gate
    x2c = jnp.concatenate([x2, x3], axis=1)
    N, Cin, H1, W1 = x1.shape
    ks = kernel_size
    pooled = x1.reshape(N, Cin, H1 // ks, ks, W1 // ks, ks).mean(axis=(3, 5))
    x_1 = jax.nn.relu(bn(conv(pooled, params["att_w"], params["att_b"], 0),
                         params["att_g"], params["att_be"],
                         params["att_rm"], params["att_rv"]))
    b1_, c1_, w1_, h1_ = x_1.shape
    b2_, c2_, w2_, h2_ = x2c.shape
    a = jnp.tile(x_1.reshape(b1_ * c1_, w1_, h1_), (1, w1_, h1_))
    c = (a * x2c.reshape(b2_ * c2_, w2_, h2_)).reshape(b2_, c2_, w2_, h2_)

    # reduce_dim + bilinear x2 (align_corners=True)
    x1r = conv(x1, params["rd_w"], params["rd_b"], 1)
    _, _, Hr, Wr = x1r.shape
    My = jnp.asarray(_interp_matrix_np(Hr, 2 * Hr))
    Mx = jnp.asarray(_interp_matrix_np(Wr, 2 * Wr))
    x1r = jnp.einsum("oh,nchw,pw->ncop", My, x1r, Mx)

    # cat + double_conv (Dropout identity in eval mode)
    x = jnp.concatenate([x1r, c], axis=1)
    x = leaky(bn(conv(x, params["c1_w"], params["c1_b"], 1),
                 params["bn1_g"], params["bn1_be"],
                 params["bn1_rm"], params["bn1_rv"]))
    x = leaky(bn(conv(x, params["c2_w"], params["c2_b"], 1),
                 params["bn2_g"], params["bn2_be"],
                 params["bn2_rm"], params["bn2_rv"]))
    return x


# ---------------------------------------------------------------------------
# Demo / self-check
# ---------------------------------------------------------------------------

if __name__ == "__main__":
    # up1(in_ch=8, out_ch=12, bilinear=True, attention_up=True, kernel_size=2)
    in_ch, out_ch, kernel_size = 8, 12, 2
    ca = out_ch - in_ch          # attention / skip channels          -> 4
    cr = 2 * in_ch - out_ch      # reduce_dim output channels         -> 4
    N = 2
    H1 = W1 = 2 * kernel_size ** 2   # 8  ((H1/ks)^2 == 2*H1 required by attention_gate)
    H2 = W2 = 2 * H1                 # 16

    keys = jax.random.split(jax.random.PRNGKey(0), 24)

    def rnd(k, shape, s=0.1):
        return s * jax.random.normal(k, shape, jnp.float32)

    params = {
        # attention_gate.high_level: Conv2d(in_ch, out_ch-in_ch, 1) + BN + ReLU
        "att_w": rnd(keys[0], (ca, in_ch, 1, 1)),
        "att_b": rnd(keys[1], (ca,)),
        "att_g": 1.0 + rnd(keys[2], (ca,)),
        "att_be": rnd(keys[3], (ca,)),
        "att_rm": rnd(keys[4], (ca,)),
        "att_rv": jnp.abs(1.0 + rnd(keys[5], (ca,))),
        # reduce_dim: Conv2d(in_ch, 2*in_ch-out_ch, 3, padding=1)
        "rd_w": rnd(keys[6], (cr, in_ch, 3, 3)),
        "rd_b": rnd(keys[7], (cr,)),
        # double_conv: conv1 + BN1, conv2 + BN2
        "c1_w": rnd(keys[8], (out_ch, in_ch, 3, 3)),
        "c1_b": rnd(keys[9], (out_ch,)),
        "bn1_g": 1.0 + rnd(keys[10], (out_ch,)),
        "bn1_be": rnd(keys[11], (out_ch,)),
        "bn1_rm": rnd(keys[12], (out_ch,)),
        "bn1_rv": jnp.abs(1.0 + rnd(keys[13], (out_ch,))),
        "c2_w": rnd(keys[14], (out_ch, out_ch, 3, 3)),
        "c2_b": rnd(keys[15], (out_ch,)),
        "bn2_g": 1.0 + rnd(keys[16], (out_ch,)),
        "bn2_be": rnd(keys[17], (out_ch,)),
        "bn2_rm": rnd(keys[18], (out_ch,)),
        "bn2_rv": jnp.abs(1.0 + rnd(keys[19], (out_ch,))),
    }

    # Inputs (NCHW). x2/x3 are skip features whose channels sum to out_ch-in_ch.
    x1 = jax.random.normal(keys[20], (N, in_ch, H1, W1), jnp.float32)
    x2 = jax.random.normal(keys[21], (N, ca // 2, H2, W2), jnp.float32)
    x3 = jax.random.normal(keys[22], (N, ca - ca // 2, H2, W2), jnp.float32)

    fwd = jax.jit(up1_forward, static_argnames=("kernel_size",))
    out = jax.block_until_ready(fwd(x3, x2, x1, params, kernel_size=kernel_size))
    ref = jax.block_until_ready(
        _ref_up1_forward(x3, x2, x1, params, kernel_size=kernel_size))

    assert out.shape == (N, out_ch, H2, W2), out.shape
    np.testing.assert_allclose(np.asarray(out), np.asarray(ref),
                               rtol=1e-4, atol=1e-4)
    print("KERNEL_OK")
</pallas_src>

<mosaic_0001>
module attributes {stable_mosaic.version = 11 : i64} {
  func.func @_up1_kernel(%arg0: i32, %arg1: memref<1x8x64xf32, #tpu.memory_space<vmem>>, %arg2: memref<1x2x256xf32, #tpu.memory_space<vmem>>, %arg3: memref<1x2x256xf32, #tpu.memory_space<vmem>>, %arg4: memref<64x16xf32, #tpu.memory_space<vmem>>, %arg5: memref<16x256xf32, #tpu.memory_space<vmem>>, %arg6: memref<64x256xf32, #tpu.memory_space<vmem>>, %arg7: memref<4x8xf32, #tpu.memory_space<vmem>>, %arg8: memref<4x1xf32, #tpu.memory_space<vmem>>, %arg9: memref<4x72xf32, #tpu.memory_space<vmem>>, %arg10: memref<4x1xf32, #tpu.memory_space<vmem>>, %arg11: memref<12x72xf32, #tpu.memory_space<vmem>>, %arg12: memref<12x1xf32, #tpu.memory_space<vmem>>, %arg13: memref<12x108xf32, #tpu.memory_space<vmem>>, %arg14: memref<12x1xf32, #tpu.memory_space<vmem>>, %arg15: memref<1x12x256xf32, #tpu.memory_space<vmem>>) attributes {dimension_semantics = [#tpu.dimension_semantics<parallel>], iteration_bounds = array<i64: 2>, scalar_prefetch = 0 : i64, scratch_operands = 0 : i64, tpu.core_type = #tpu.core_type<tc>, window_params = [{transform_indices = @transform_0, window_bounds = array<i64: 1, 8, 64>}, {transform_indices = @transform_1, window_bounds = array<i64: 1, 2, 256>}, {transform_indices = @transform_2, window_bounds = array<i64: 1, 2, 256>}, {pipeline_mode = #tpu.pipeline_mode<synchronous>, transform_indices = @transform_3, window_bounds = array<i64: 64, 16>}, {pipeline_mode = #tpu.pipeline_mode<synchronous>, transform_indices = @transform_4, window_bounds = array<i64: 16, 256>}, {pipeline_mode = #tpu.pipeline_mode<synchronous>, transform_indices = @transform_5, window_bounds = array<i64: 64, 256>}, {pipeline_mode = #tpu.pipeline_mode<synchronous>, transform_indices = @transform_6, window_bounds = array<i64: 4, 8>}, {pipeline_mode = #tpu.pipeline_mode<synchronous>, transform_indices = @transform_7, window_bounds = array<i64: 4, 1>}, {pipeline_mode = #tpu.pipeline_mode<synchronous>, transform_indices = @transform_8, window_bounds = array<i64: 4, 72>}, {pipeline_mode = #tpu.pipeline_mode<synchronous>, transform_indices = @transform_9, window_bounds = array<i64: 4, 1>}, {pipeline_mode = #tpu.pipeline_mode<synchronous>, transform_indices = @transform_10, window_bounds = array<i64: 12, 72>}, {pipeline_mode = #tpu.pipeline_mode<synchronous>, transform_indices = @transform_11, window_bounds = array<i64: 12, 1>}, {pipeline_mode = #tpu.pipeline_mode<synchronous>, transform_indices = @transform_12, window_bounds = array<i64: 12, 108>}, {pipeline_mode = #tpu.pipeline_mode<synchronous>, transform_indices = @transform_13, window_bounds = array<i64: 12, 1>}, {transform_indices = @transform_14, window_bounds = array<i64: 1, 12, 256>}]} {
    %c0 = arith.constant 0 : index
    %c0_0 = arith.constant 0 : index
    %c0_1 = arith.constant 0 : index
    %0 = vector.load %arg1[%c0, %c0_0, %c0_1] : memref<1x8x64xf32, #tpu.memory_space<vmem>>, vector<1x8x64xf32>
    %1 = vector.shape_cast %0 : vector<1x8x64xf32> to vector<8x64xf32>
    %c0_2 = arith.constant 0 : index
    %c0_3 = arith.constant 0 : index
    %c0_4 = arith.constant 0 : index
    %2 = vector.load %arg2[%c0_2, %c0_3, %c0_4] : memref<1x2x256xf32, #tpu.memory_space<vmem>>, vector<1x2x256xf32>
    %3 = vector.shape_cast %2 : vector<1x2x256xf32> to vector<2x256xf32>
    %c0_5 = arith.constant 0 : index
    %c0_6 = arith.constant 0 : index
    %c0_7 = arith.constant 0 : index
    %4 = vector.load %arg3[%c0_5, %c0_6, %c0_7] : memref<1x2x256xf32, #tpu.memory_space<vmem>>, vector<1x2x256xf32>
    %5 = vector.shape_cast %4 : vector<1x2x256xf32> to vector<2x256xf32>
    %6 = tpu.concatenate %3, %5 in 0 : vector<2x256xf32>, vector<2x256xf32> -> vector<4x256xf32>
    %c0_8 = arith.constant 0 : index
    %c0_9 = arith.constant 0 : index
    %7 = vector.load %arg4[%c0_8, %c0_9] : memref<64x16xf32, #tpu.memory_space<vmem>>, vector<64x16xf32>
    %cst = arith.constant dense<0.000000e+00> : vector<8x16xf32>
    %8 = tpu.matmul %1, %7, %cst {dimension_numbers = #tpu.dot_dimension_numbers<[1], [0], [0], [1], [0, 0, 1, 1], [], []>} : vector<8x64xf32>, vector<64x16xf32>, vector<8x16xf32> -> vector<8x16xf32>
    %c0_10 = arith.constant 0 : index
    %c0_11 = arith.constant 0 : index
    %9 = vector.load %arg7[%c0_10, %c0_11] : memref<4x8xf32, #tpu.memory_space<vmem>>, vector<4x8xf32>
    %cst_12 = arith.constant dense<0.000000e+00> : vector<4x16xf32>
    %10 = tpu.matmul %9, %8, %cst_12 {dimension_numbers = #tpu.dot_dimension_numbers<[1], [0], [0], [1], [0, 0, 1, 1], [], []>} : vector<4x8xf32>, vector<8x16xf32>, vector<4x16xf32> -> vector<4x16xf32>
    %c0_13 = arith.constant 0 : index
    %c0_14 = arith.constant 0 : index
    %11 = vector.load %arg8[%c0_13, %c0_14] : memref<4x1xf32, #tpu.memory_space<vmem>>, vector<4x1xf32>
    %12 = vector.broadcast %11 : vector<4x1xf32> to vector<4x16xf32>
    %13 = arith.addf %10, %12 : vector<4x16xf32>
    %cst_15 = arith.constant 0.000000e+00 : f32
    %14 = vector.broadcast %cst_15 : f32 to vector<4x16xf32>
    %15 = arith.maximumf %13, %14 : vector<4x16xf32>
    %c0_16 = arith.constant 0 : index
    %c0_17 = arith.constant 0 : index
    %16 = vector.load %arg5[%c0_16, %c0_17] : memref<16x256xf32, #tpu.memory_space<vmem>>, vector<16x256xf32>
    %cst_18 = arith.constant dense<0.000000e+00> : vector<4x256xf32>
    %17 = tpu.matmul %15, %16, %cst_18 {dimension_numbers = #tpu.dot_dimension_numbers<[1], [0], [0], [1], [0, 0, 1, 1], [], []>} : vector<4x16xf32>, vector<16x256xf32>, vector<4x256xf32> -> vector<4x256xf32>
    %18 = arith.mulf %17, %6 : vector<4x256xf32>
    %c0_19 = arith.constant 0 : index
    %c0_20 = arith.constant 0 : index
    %19 = vector.load %arg9[%c0_19, %c0_20] : memref<4x72xf32, #tpu.memory_space<vmem>>, vector<4x72xf32>
    %cst_21 = arith.constant 0.000000e+00 : f32
    %20 = vector.broadcast %cst_21 : f32 to vector<8x128xf32>
    %21 = tpu.concatenate %20, %1, %20 in 1 : vector<8x128xf32>, vector<8x64xf32>, vector<8x128xf32> -> vector<8x320xf32>
    %22 = tpu.iota {dimensions = array<i32: 1>} : vector<1x64xi32>
    %c8_i32 = arith.constant 8 : i32
    %c0_i32 = arith.constant 0 : i32
    %23 = arith.cmpi eq, %c8_i32, %c0_i32 : i32
    %c1_i32 = arith.constant 1 : i32
    %24 = arith.select %23, %c1_i32, %c8_i32 : i32
    %25 = vector.broadcast %24 : i32 to vector<1x64xi32>
    %26 = arith.remsi %22, %25 : vector<1x64xi32>
    %c0_i32_22 = arith.constant 0 : i32
    %27 = vector.broadcast %c0_i32_22 : i32 to vector<1x64xi32>
    %28 = arith.cmpi ne, %26, %27 : vector<1x64xi32>
    %c0_i32_23 = arith.constant 0 : i32
    %29 = vector.broadcast %c0_i32_23 : i32 to vector<1x64xi32>
    %30 = arith.cmpi slt, %26, %29 : vector<1x64xi32>
    %c0_i32_24 = arith.constant 0 : i32
    %31 = arith.cmpi slt, %24, %c0_i32_24 : i32
    %32 = vector.broadcast %31 : i1 to vector<1x64xi1>
    %33 = vector.broadcast %32 : vector<1x64xi1> to vector<1x64xi1>
    %34 = arith.xori %30, %33 : vector<1x64xi1>
    %35 = arith.andi %34, %28 : vector<1x64xi1>
    %36 = vector.broadcast %24 : i32 to vector<1x64xi32>
    %37 = arith.addi %26, %36 : vector<1x64xi32>
    %38 = arith.select %35, %37, %26 : vector<1x64xi1>, vector<1x64xi32>
    %c1_i32_25 = arith.constant 1 : i32
    %39 = vector.broadcast %c1_i32_25 : i32 to vector<1x64xi32>
    %40 = arith.cmpi sge, %38, %39 : vector<1x64xi32>
    %41 = arith.extui %40 : vector<1x64xi1> to vector<1x64xi32>
    %42 = arith.sitofp %41 : vector<1x64xi32> to vector<1x64xf32>
    %c6_i32 = arith.constant 6 : i32
    %43 = vector.broadcast %c6_i32 : i32 to vector<1x64xi32>
    %44 = arith.cmpi sle, %38, %43 : vector<1x64xi32>
    %45 = arith.extui %44 : vector<1x64xi1> to vector<1x64xi32>
    %46 = arith.sitofp %45 : vector<1x64xi32> to vector<1x64xf32>
    %47 = vector.extract_strided_slice %21 {offsets = [0, 119], sizes = [8, 64], strides = [1, 1]} : vector<8x320xf32> to vector<8x64xf32>
    %48 = vector.broadcast %42 : vector<1x64xf32> to vector<8x64xf32>
    %49 = arith.mulf %47, %48 : vector<8x64xf32>
    %50 = vector.extract_strided_slice %21 {offsets = [0, 120], sizes = [8, 64], strides = [1, 1]} : vector<8x320xf32> to vector<8x64xf32>
    %51 = vector.extract_strided_slice %21 {offsets = [0, 121], sizes = [8, 64], strides = [1, 1]} : vector<8x320xf32> to vector<8x64xf32>
    %52 = vector.broadcast %46 : vector<1x64xf32> to vector<8x64xf32>
    %53 = arith.mulf %51, %52 : vector<8x64xf32>
    %54 = vector.extract_strided_slice %21 {offsets = [0, 127], sizes = [8, 64], strides = [1, 1]} : vector<8x320xf32> to vector<8x64xf32>
    %55 = vector.broadcast %42 : vector<1x64xf32> to vector<8x64xf32>
    %56 = arith.mulf %54, %55 : vector<8x64xf32>
    %57 = vector.extract_strided_slice %21 {offsets = [0, 128], sizes = [8, 64], strides = [1, 1]} : vector<8x320xf32> to vector<8x64xf32>
    %58 = vector.extract_strided_slice %21 {offsets = [0, 129], sizes = [8, 64], strides = [1, 1]} : vector<8x320xf32> to vector<8x64xf32>
    %59 = vector.broadcast %46 : vector<1x64xf32> to vector<8x64xf32>
    %60 = arith.mulf %58, %59 : vector<8x64xf32>
    %61 = vector.extract_strided_slice %21 {offsets = [0, 135], sizes = [8, 64], strides = [1, 1]} : vector<8x320xf32> to vector<8x64xf32>
    %62 = vector.broadcast %42 : vector<1x64xf32> to vector<8x64xf32>
    %63 = arith.mulf %61, %62 : vector<8x64xf32>
    %64 = vector.extract_strided_slice %21 {offsets = [0, 136], sizes = [8, 64], strides = [1, 1]} : vector<8x320xf32> to vector<8x64xf32>
    %65 = vector.extract_strided_slice %21 {offsets = [0, 137], sizes = [8, 64], strides = [1, 1]} : vector<8x320xf32> to vector<8x64xf32>
    %66 = vector.broadcast %46 : vector<1x64xf32> to vector<8x64xf32>
    %67 = arith.mulf %65, %66 : vector<8x64xf32>
    %68 = tpu.concatenate %49, %50, %53, %56, %57, %60, %63, %64, %67 in 0 : vector<8x64xf32>, vector<8x64xf32>, vector<8x64xf32>, vector<8x64xf32>, vector<8x64xf32>, vector<8x64xf32>, vector<8x64xf32>, vector<8x64xf32>, vector<8x64xf32> -> vector<72x64xf32>
    %cst_26 = arith.constant dense<0.000000e+00> : vector<4x64xf32>
    %69 = tpu.matmul %19, %68, %cst_26 {dimension_numbers = #tpu.dot_dimension_numbers<[1], [0], [0], [1], [0, 0, 1, 1], [], []>} : vector<4x72xf32>, vector<72x64xf32>, vector<4x64xf32> -> vector<4x64xf32>
    %c0_27 = arith.constant 0 : index
    %c0_28 = arith.constant 0 : index
    %70 = vector.load %arg10[%c0_27, %c0_28] : memref<4x1xf32, #tpu.memory_space<vmem>>, vector<4x1xf32>
    %71 = vector.broadcast %70 : vector<4x1xf32> to vector<4x64xf32>
    %72 = arith.addf %69, %71 : vector<4x64xf32>
    %c0_29 = arith.constant 0 : index
    %c0_30 = arith.constant 0 : index
    %73 = vector.load %arg6[%c0_29, %c0_30] : memref<64x256xf32, #tpu.memory_space<vmem>>, vector<64x256xf32>
    %cst_31 = arith.constant dense<0.000000e+00> : vector<4x256xf32>
    %74 = tpu.matmul %72, %73, %cst_31 {dimension_numbers = #tpu.dot_dimension_numbers<[1], [0], [0], [1], [0, 0, 1, 1], [], []>} : vector<4x64xf32>, vector<64x256xf32>, vector<4x256xf32> -> vector<4x256xf32>
    %75 = tpu.concatenate %74, %18 in 0 : vector<4x256xf32>, vector<4x256xf32> -> vector<8x256xf32>
    %c0_32 = arith.constant 0 : index
    %c0_33 = arith.constant 0 : index
    %76 = vector.load %arg11[%c0_32, %c0_33] : memref<12x72xf32, #tpu.memory_space<vmem>>, vector<12x72xf32>
    %cst_34 = arith.constant 0.000000e+00 : f32
    %77 = vector.broadcast %cst_34 : f32 to vector<8x128xf32>
    %78 = tpu.concatenate %77, %75, %77 in 1 : vector<8x128xf32>, vector<8x256xf32>, vector<8x128xf32> -> vector<8x512xf32>
    %79 = tpu.iota {dimensions = array<i32: 1>} : vector<1x256xi32>
    %c16_i32 = arith.constant 16 : i32
    %c0_i32_35 = arith.constant 0 : i32
    %80 = arith.cmpi eq, %c16_i32, %c0_i32_35 : i32
    %c1_i32_36 = arith.constant 1 : i32
    %81 = arith.select %80, %c1_i32_36, %c16_i32 : i32
    %82 = vector.broadcast %81 : i32 to vector<1x256xi32>
    %83 = arith.remsi %79, %82 : vector<1x256xi32>
    %c0_i32_37 = arith.constant 0 : i32
    %84 = vector.broadcast %c0_i32_37 : i32 to vector<1x256xi32>
    %85 = arith.cmpi ne, %83, %84 : vector<1x256xi32>
    %c0_i32_38 = arith.constant 0 : i32
    %86 = vector.broadcast %c0_i32_38 : i32 to vector<1x256xi32>
    %87 = arith.cmpi slt, %83, %86 : vector<1x256xi32>
    %c0_i32_39 = arith.constant 0 : i32
    %88 = arith.cmpi slt, %81, %c0_i32_39 : i32
    %89 = vector.broadcast %88 : i1 to vector<1x256xi1>
    %90 = vector.broadcast %89 : vector<1x256xi1> to vector<1x256xi1>
    %91 = arith.xori %87, %90 : vector<1x256xi1>
    %92 = arith.andi %91, %85 : vector<1x256xi1>
    %93 = vector.broadcast %81 : i32 to vector<1x256xi32>
    %94 = arith.addi %83, %93 : vector<1x256xi32>
    %95 = arith.select %92, %94, %83 : vector<1x256xi1>, vector<1x256xi32>
    %c1_i32_40 = arith.constant 1 : i32
    %96 = vector.broadcast %c1_i32_40 : i32 to vector<1x256xi32>
    %97 = arith.cmpi sge, %95, %96 : vector<1x256xi32>
    %98 = arith.extui %97 : vector<1x256xi1> to vector<1x256xi32>
    %99 = arith.sitofp %98 : vector<1x256xi32> to vector<1x256xf32>
    %c14_i32 = arith.constant 14 : i32
    %100 = vector.broadcast %c14_i32 : i32 to vector<1x256xi32>
    %101 = arith.cmpi sle, %95, %100 : vector<1x256xi32>
    %102 = arith.extui %101 : vector<1x256xi1> to vector<1x256xi32>
    %103 = arith.sitofp %102 : vector<1x256xi32> to vector<1x256xf32>
    %104 = vector.extract_strided_slice %78 {offsets = [0, 111], sizes = [8, 256], strides = [1, 1]} : vector<8x512xf32> to vector<8x256xf32>
    %105 = vector.broadcast %99 : vector<1x256xf32> to vector<8x256xf32>
    %106 = arith.mulf %104, %105 : vector<8x256xf32>
    %107 = vector.extract_strided_slice %78 {offsets = [0, 112], sizes = [8, 256], strides = [1, 1]} : vector<8x512xf32> to vector<8x256xf32>
    %108 = vector.extract_strided_slice %78 {offsets = [0, 113], sizes = [8, 256], strides = [1, 1]} : vector<8x512xf32> to vector<8x256xf32>
    %109 = vector.broadcast %103 : vector<1x256xf32> to vector<8x256xf32>
    %110 = arith.mulf %108, %109 : vector<8x256xf32>
    %111 = vector.extract_strided_slice %78 {offsets = [0, 127], sizes = [8, 256], strides = [1, 1]} : vector<8x512xf32> to vector<8x256xf32>
    %112 = vector.broadcast %99 : vector<1x256xf32> to vector<8x256xf32>
    %113 = arith.mulf %111, %112 : vector<8x256xf32>
    %114 = vector.extract_strided_slice %78 {offsets = [0, 128], sizes = [8, 256], strides = [1, 1]} : vector<8x512xf32> to vector<8x256xf32>
    %115 = vector.extract_strided_slice %78 {offsets = [0, 129], sizes = [8, 256], strides = [1, 1]} : vector<8x512xf32> to vector<8x256xf32>
    %116 = vector.broadcast %103 : vector<1x256xf32> to vector<8x256xf32>
    %117 = arith.mulf %115, %116 : vector<8x256xf32>
    %118 = vector.extract_strided_slice %78 {offsets = [0, 143], sizes = [8, 256], strides = [1, 1]} : vector<8x512xf32> to vector<8x256xf32>
    %119 = vector.broadcast %99 : vector<1x256xf32> to vector<8x256xf32>
    %120 = arith.mulf %118, %119 : vector<8x256xf32>
    %121 = vector.extract_strided_slice %78 {offsets = [0, 144], sizes = [8, 256], strides = [1, 1]} : vector<8x512xf32> to vector<8x256xf32>
    %122 = vector.extract_strided_slice %78 {offsets = [0, 145], sizes = [8, 256], strides = [1, 1]} : vector<8x512xf32> to vector<8x256xf32>
    %123 = vector.broadcast %103 : vector<1x256xf32> to vector<8x256xf32>
    %124 = arith.mulf %122, %123 : vector<8x256xf32>
    %125 = tpu.concatenate %106, %107, %110, %113, %114, %117, %120, %121, %124 in 0 : vector<8x256xf32>, vector<8x256xf32>, vector<8x256xf32>, vector<8x256xf32>, vector<8x256xf32>, vector<8x256xf32>, vector<8x256xf32>, vector<8x256xf32>, vector<8x256xf32> -> vector<72x256xf32>
    %cst_41 = arith.constant dense<0.000000e+00> : vector<12x256xf32>
    %126 = tpu.matmul %76, %125, %cst_41 {dimension_numbers = #tpu.dot_dimension_numbers<[1], [0], [0], [1], [0, 0, 1, 1], [], []>} : vector<12x72xf32>, vector<72x256xf32>, vector<12x256xf32> -> vector<12x256xf32>
    %c0_42 = arith.constant 0 : index
    %c0_43 = arith.constant 0 : index
    %127 = vector.load %arg12[%c0_42, %c0_43] : memref<12x1xf32, #tpu.memory_space<vmem>>, vector<12x1xf32>
    %128 = vector.broadcast %127 : vector<12x1xf32> to vector<12x256xf32>
    %129 = arith.addf %126, %128 : vector<12x256xf32>
    %cst_44 = arith.constant 0.000000e+00 : f32
    %130 = vector.broadcast %cst_44 : f32 to vector<12x256xf32>
    %131 = arith.cmpf ogt, %129, %130 : vector<12x256xf32>
    %cst_45 = arith.constant 0.00999999977 : f32
    %132 = vector.broadcast %cst_45 : f32 to vector<12x256xf32>
    %133 = arith.mulf %132, %129 : vector<12x256xf32>
    %134 = arith.select %131, %129, %133 : vector<12x256xi1>, vector<12x256xf32>
    %c0_46 = arith.constant 0 : index
    %c0_47 = arith.constant 0 : index
    %135 = vector.load %arg13[%c0_46, %c0_47] : memref<12x108xf32, #tpu.memory_space<vmem>>, vector<12x108xf32>
    %cst_48 = arith.constant 0.000000e+00 : f32
    %136 = vector.broadcast %cst_48 : f32 to vector<12x128xf32>
    %137 = tpu.concatenate %136, %134, %136 in 1 : vector<12x128xf32>, vector<12x256xf32>, vector<12x128xf32> -> vector<12x512xf32>
    %138 = tpu.iota {dimensions = array<i32: 1>} : vector<1x256xi32>
    %c16_i32_49 = arith.constant 16 : i32
    %c0_i32_50 = arith.constant 0 : i32
    %139 = arith.cmpi eq, %c16_i32_49, %c0_i32_50 : i32
    %c1_i32_51 = arith.constant 1 : i32
    %140 = arith.select %139, %c1_i32_51, %c16_i32_49 : i32
    %141 = vector.broadcast %140 : i32 to vector<1x256xi32>
    %142 = arith.remsi %138, %141 : vector<1x256xi32>
    %c0_i32_52 = arith.constant 0 : i32
    %143 = vector.broadcast %c0_i32_52 : i32 to vector<1x256xi32>
    %144 = arith.cmpi ne, %142, %143 : vector<1x256xi32>
    %c0_i32_53 = arith.constant 0 : i32
    %145 = vector.broadcast %c0_i32_53 : i32 to vector<1x256xi32>
    %146 = arith.cmpi slt, %142, %145 : vector<1x256xi32>
    %c0_i32_54 = arith.constant 0 : i32
    %147 = arith.cmpi slt, %140, %c0_i32_54 : i32
    %148 = vector.broadcast %147 : i1 to vector<1x256xi1>
    %149 = vector.broadcast %148 : vector<1x256xi1> to vector<1x256xi1>
    %150 = arith.xori %146, %149 : vector<1x256xi1>
    %151 = arith.andi %150, %144 : vector<1x256xi1>
    %152 = vector.broadcast %140 : i32 to vector<1x256xi32>
    %153 = arith.addi %142, %152 : vector<1x256xi32>
    %154 = arith.select %151, %153, %142 : vector<1x256xi1>, vector<1x256xi32>
    %c1_i32_55 = arith.constant 1 : i32
    %155 = vector.broadcast %c1_i32_55 : i32 to vector<1x256xi32>
    %156 = arith.cmpi sge, %154, %155 : vector<1x256xi32>
    %157 = arith.extui %156 : vector<1x256xi1> to vector<1x256xi32>
    %158 = arith.sitofp %157 : vector<1x256xi32> to vector<1x256xf32>
    %c14_i32_56 = arith.constant 14 : i32
    %159 = vector.broadcast %c14_i32_56 : i32 to vector<1x256xi32>
    %160 = arith.cmpi sle, %154, %159 : vector<1x256xi32>
    %161 = arith.extui %160 : vector<1x256xi1> to vector<1x256xi32>
    %162 = arith.sitofp %161 : vector<1x256xi32> to vector<1x256xf32>
    %163 = vector.extract_strided_slice %137 {offsets = [0, 111], sizes = [12, 256], strides = [1, 1]} : vector<12x512xf32> to vector<12x256xf32>
    %164 = vector.broadcast %158 : vector<1x256xf32> to vector<12x256xf32>
    %165 = arith.mulf %163, %164 : vector<12x256xf32>
    %166 = vector.extract_strided_slice %137 {offsets = [0, 112], sizes = [12, 256], strides = [1, 1]} : vector<12x512xf32> to vector<12x256xf32>
    %167 = vector.extract_strided_slice %137 {offsets = [0, 113], sizes = [12, 256], strides = [1, 1]} : vector<12x512xf32> to vector<12x256xf32>
    %168 = vector.broadcast %162 : vector<1x256xf32> to vector<12x256xf32>
    %169 = arith.mulf %167, %168 : vector<12x256xf32>
    %170 = vector.extract_strided_slice %137 {offsets = [0, 127], sizes = [12, 256], strides = [1, 1]} : vector<12x512xf32> to vector<12x256xf32>
    %171 = vector.broadcast %158 : vector<1x256xf32> to vector<12x256xf32>
    %172 = arith.mulf %170, %171 : vector<12x256xf32>
    %173 = vector.extract_strided_slice %137 {offsets = [0, 128], sizes = [12, 256], strides = [1, 1]} : vector<12x512xf32> to vector<12x256xf32>
    %174 = vector.extract_strided_slice %137 {offsets = [0, 129], sizes = [12, 256], strides = [1, 1]} : vector<12x512xf32> to vector<12x256xf32>
    %175 = vector.broadcast %162 : vector<1x256xf32> to vector<12x256xf32>
    %176 = arith.mulf %174, %175 : vector<12x256xf32>
    %177 = vector.extract_strided_slice %137 {offsets = [0, 143], sizes = [12, 256], strides = [1, 1]} : vector<12x512xf32> to vector<12x256xf32>
    %178 = vector.broadcast %158 : vector<1x256xf32> to vector<12x256xf32>
    %179 = arith.mulf %177, %178 : vector<12x256xf32>
    %180 = vector.extract_strided_slice %137 {offsets = [0, 144], sizes = [12, 256], strides = [1, 1]} : vector<12x512xf32> to vector<12x256xf32>
    %181 = vector.extract_strided_slice %137 {offsets = [0, 145], sizes = [12, 256], strides = [1, 1]} : vector<12x512xf32> to vector<12x256xf32>
    %182 = vector.broadcast %162 : vector<1x256xf32> to vector<12x256xf32>
    %183 = arith.mulf %181, %182 : vector<12x256xf32>
    %184 = tpu.concatenate %165, %166, %169, %172, %173, %176, %179, %180, %183 in 0 : vector<12x256xf32>, vector<12x256xf32>, vector<12x256xf32>, vector<12x256xf32>, vector<12x256xf32>, vector<12x256xf32>, vector<12x256xf32>, vector<12x256xf32>, vector<12x256xf32> -> vector<108x256xf32>
    %cst_57 = arith.constant dense<0.000000e+00> : vector<12x256xf32>
    %185 = tpu.matmul %135, %184, %cst_57 {dimension_numbers = #tpu.dot_dimension_numbers<[1], [0], [0], [1], [0, 0, 1, 1], [], []>} : vector<12x108xf32>, vector<108x256xf32>, vector<12x256xf32> -> vector<12x256xf32>
    %c0_58 = arith.constant 0 : index
    %c0_59 = arith.constant 0 : index
    %186 = vector.load %arg14[%c0_58, %c0_59] : memref<12x1xf32, #tpu.memory_space<vmem>>, vector<12x1xf32>
    %187 = vector.broadcast %186 : vector<12x1xf32> to vector<12x256xf32>
    %188 = arith.addf %185, %187 : vector<12x256xf32>
    %cst_60 = arith.constant 0.000000e+00 : f32
    %189 = vector.broadcast %cst_60 : f32 to vector<12x256xf32>
    %190 = arith.cmpf ogt, %188, %189 : vector<12x256xf32>
    %cst_61 = arith.constant 0.00999999977 : f32
    %191 = vector.broadcast %cst_61 : f32 to vector<12x256xf32>
    %192 = arith.mulf %191, %188 : vector<12x256xf32>
    %193 = arith.select %190, %188, %192 : vector<12x256xi1>, vector<12x256xf32>
    %c0_62 = arith.constant 0 : index
    %c0_63 = arith.constant 0 : index
    %c0_64 = arith.constant 0 : index
    %194 = vector.load %arg15[%c0_62, %c0_63, %c0_64] : memref<1x12x256xf32, #tpu.memory_space<vmem>>, vector<1x12x256xf32>
    %195 = vector.shape_cast %194 : vector<1x12x256xf32> to vector<12x256xf32>
    %196 = vector.shape_cast %193 : vector<12x256xf32> to vector<1x12x256xf32>
    tpu.vector_store %arg15[%c0_62, %c0_63, %c0_64], %196 {strides = array<i32>} : memref<1x12x256xf32, #tpu.memory_space<vmem>>, vector<1x12x256xf32>,
    return
  }
  func.func @transform_0(%arg0: i32) -> (i32, i32, i32) {
    %c0_i32 = arith.constant 0 : i32
    %c0_i32_0 = arith.constant 0 : i32
    %c0_i32_1 = arith.constant 0 : i32
    return %arg0, %c0_i32, %c0_i32_0 : i32, i32, i32
  }
  func.func @transform_1(%arg0: i32) -> (i32, i32, i32) {
    %c0_i32 = arith.constant 0 : i32
    %c0_i32_0 = arith.constant 0 : i32
    %c0_i32_1 = arith.constant 0 : i32
    return %arg0, %c0_i32, %c0_i32_0 : i32, i32, i32
  }
  func.func @transform_2(%arg0: i32) -> (i32, i32, i32) {
    %c0_i32 = arith.constant 0 : i32
    %c0_i32_0 = arith.constant 0 : i32
    %c0_i32_1 = arith.constant 0 : i32
    return %arg0, %c0_i32, %c0_i32_0 : i32, i32, i32
  }
  func.func @transform_3(%arg0: i32) -> (i32, i32) {
    %c0_i32 = arith.constant 0 : i32
    %c0_i32_0 = arith.constant 0 : i32
    %c0_i32_1 = arith.constant 0 : i32
    return %c0_i32, %c0_i32_0 : i32, i32
  }
  func.func @transform_4(%arg0: i32) -> (i32, i32) {
    %c0_i32 = arith.constant 0 : i32
    %c0_i32_0 = arith.constant 0 : i32
    %c0_i32_1 = arith.constant 0 : i32
    return %c0_i32, %c0_i32_0 : i32, i32
  }
  func.func @transform_5(%arg0: i32) -> (i32, i32) {
    %c0_i32 = arith.constant 0 : i32
    %c0_i32_0 = arith.constant 0 : i32
    %c0_i32_1 = arith.constant 0 : i32
    return %c0_i32, %c0_i32_0 : i32, i32
  }
  func.func @transform_6(%arg0: i32) -> (i32, i32) {
    %c0_i32 = arith.constant 0 : i32
    %c0_i32_0 = arith.constant 0 : i32
    %c0_i32_1 = arith.constant 0 : i32
    return %c0_i32, %c0_i32_0 : i32, i32
  }
  func.func @transform_7(%arg0: i32) -> (i32, i32) {
    %c0_i32 = arith.constant 0 : i32
    %c0_i32_0 = arith.constant 0 : i32
    %c0_i32_1 = arith.constant 0 : i32
    return %c0_i32, %c0_i32_0 : i32, i32
  }
  func.func @transform_8(%arg0: i32) -> (i32, i32) {
    %c0_i32 = arith.constant 0 : i32
    %c0_i32_0 = arith.constant 0 : i32
    %c0_i32_1 = arith.constant 0 : i32
    return %c0_i32, %c0_i32_0 : i32, i32
  }
  func.func @transform_9(%arg0: i32) -> (i32, i32) {
    %c0_i32 = arith.constant 0 : i32
    %c0_i32_0 = arith.constant 0 : i32
    %c0_i32_1 = arith.constant 0 : i32
    return %c0_i32, %c0_i32_0 : i32, i32
  }
  func.func @transform_10(%arg0: i32) -> (i32, i32) {
    %c0_i32 = arith.constant 0 : i32
    %c0_i32_0 = arith.constant 0 : i32
    %c0_i32_1 = arith.constant 0 : i32
    return %c0_i32, %c0_i32_0 : i32, i32
  }
  func.func @transform_11(%arg0: i32) -> (i32, i32) {
    %c0_i32 = arith.constant 0 : i32
    %c0_i32_0 = arith.constant 0 : i32
    %c0_i32_1 = arith.constant 0 : i32
    return %c0_i32, %c0_i32_0 : i32, i32
  }
  func.func @transform_12(%arg0: i32) -> (i32, i32) {
    %c0_i32 = arith.constant 0 : i32
    %c0_i32_0 = arith.constant 0 : i32
    %c0_i32_1 = arith.constant 0 : i32
    return %c0_i32, %c0_i32_0 : i32, i32
  }
  func.func @transform_13(%arg0: i32) -> (i32, i32) {
    %c0_i32 = arith.constant 0 : i32
    %c0_i32_0 = arith.constant 0 : i32
    %c0_i32_1 = arith.constant 0 : i32
    return %c0_i32, %c0_i32_0 : i32, i32
  }
  func.func @transform_14(%arg0: i32) -> (i32, i32, i32) {
    %c0_i32 = arith.constant 0 : i32
    %c0_i32_0 = arith.constant 0 : i32
    %c0_i32_1 = arith.constant 0 : i32
    return %arg0, %c0_i32, %c0_i32_0 : i32, i32, i32
  }
}

</mosaic_0001>

<llo_original>
// kernel: up1_forward.1
$region0: #{up1_forward.1}
  #allocation0 [shape = 'u32[]', space=smem, size = 0x4, offset = 0x4, fixed_abs, tag = 'smem constant byte address 0x4 - core index']
  #allocation1 [shape = 'u32[144,128]{1,0:T(1,128)}', space=vmem, size = 0x12000, scoped, tag = 'internal scratch']
  %s0 = inlined_call_operand.vmem [shape: f32[2,8,64], index: 0, kind: input, shape index: {}]
  %s1 = inlined_call_operand.vmem [shape: f32[2,2,256], index: 1, kind: input, shape index: {}]
  %s2 = inlined_call_operand.vmem [shape: f32[2,2,256], index: 2, kind: input, shape index: {}]
  %s3 = inlined_call_operand.vmem [shape: f32[64,16], index: 3, kind: input, shape index: {}]
  %s4 = inlined_call_operand.vmem [shape: f32[16,256], index: 4, kind: input, shape index: {}]
  %s5 = inlined_call_operand.vmem [shape: f32[64,256], index: 5, kind: input, shape index: {}]
  %s6 = inlined_call_operand.vmem [shape: f32[4,8], index: 6, kind: input, shape index: {}]
  %s7 = inlined_call_operand.vmem [shape: f32[4,1], index: 7, kind: input, shape index: {}]
  %s8 = inlined_call_operand.vmem [shape: f32[4,72], index: 8, kind: input, shape index: {}]
  %s9 = inlined_call_operand.vmem [shape: f32[4,1], index: 9, kind: input, shape index: {}]
  %s10 = inlined_call_operand.vmem [shape: f32[12,72], index: 10, kind: input, shape index: {}]
  %s11 = inlined_call_operand.vmem [shape: f32[12,1], index: 11, kind: input, shape index: {}]
  %s12 = inlined_call_operand.vmem [shape: f32[12,108], index: 12, kind: input, shape index: {}]
  %s13 = inlined_call_operand.vmem [shape: f32[12,1], index: 13, kind: input, shape index: {}]
  %s14 = inlined_call_operand.vmem [shape: f32[2,12,256], index: 14, kind: output, shape index: {}]
  %s15 = sld [smem:[#allocation0]]
  $region89: #{up1_forward.1} parent=0
    _
  %s17 = ssub.s32 1, %s15
  %s18 = scalar_select 0, %s17, %s15
  loop: start=0, step=1, limit=4
  $region2: #{up1_forward.1} parent=0 // loop_pre_header
    _
  $region3: #{up1_forward.1} parent=0 // loop_header
    %s20 = sphi 0, %s24
    %p21 = scmp.ge.s32.totalorder %s20, 4
    %s30 = sphi 0, %s32
    %s33 = sphi 0, %s30
    %s34 = sphi 0, %s33
    %s50 = sphi 0, %s34
    %s56 = sphi 0, %s58
    %s59 = sphi 0, %s56
    %s60 = sphi 0, %s59
    %s76 = sphi 0, %s60
    %s82 = sphi 0, %s84
    %s85 = sphi 0, %s82
    %s86 = sphi 0, %s85
    %s102 = sphi 0, %s86
    %s106 = sphi 0, %s106
    %s108 = sphi 0, %s106
    %s109 = sphi 0, %s108
    %s123 = sphi 0, %s109
    %s127 = sphi 0, %s127
    %s129 = sphi 0, %s127
    %s130 = sphi 0, %s129
    %s144 = sphi 0, %s130
    %s148 = sphi 0, %s148
    %s150 = sphi 0, %s148
    %s151 = sphi 0, %s150
    %s165 = sphi 0, %s151
    %s169 = sphi 0, %s169
    %s171 = sphi 0, %s169
    %s172 = sphi 0, %s171
    %s186 = sphi 0, %s172
    %s190 = sphi 0, %s190
    %s192 = sphi 0, %s190
    %s193 = sphi 0, %s192
    %s207 = sphi 0, %s193
    %s211 = sphi 0, %s211
    %s213 = sphi 0, %s211
    %s214 = sphi 0, %s213
    %s228 = sphi 0, %s214
    %s232 = sphi 0, %s232
    %s234 = sphi 0, %s232
    %s235 = sphi 0, %s234
    %s249 = sphi 0, %s235
    %s253 = sphi 0, %s253
    %s255 = sphi 0, %s253
    %s256 = sphi 0, %s255
    %s270 = sphi 0, %s256
    %s274 = sphi 0, %s274
    %s276 = sphi 0, %s274
    %s277 = sphi 0, %s276
    %s291 = sphi 0, %s277
    %s295 = sphi 0, %s295
    %s297 = sphi 0, %s295
    %s298 = sphi 0, %s297
    %s312 = sphi 0, %s298
    %s316 = sphi 0, %s316
    %s318 = sphi 0, %s316
    %s319 = sphi 0, %s318
    %s333 = sphi 0, %s319
    %s339 = sphi 0, %s341
    %s342 = sphi 0, %s339
    %s343 = sphi 0, %s342
    %s359 = sphi 0, %s343
  $region4: #{up1_forward.1} parent=0 // loop_header_branch
    %23 = sbr.rel (%p21) target = $region8
  $region5: #{up1_forward.1} parent=0 // loop_body
    %s25 = ssub.s32 %s20, 1
    %s26 = ssub.s32 %s20, 2
    %s27 = sadd.s32 %s20, 1
    %s28 = ssub.s32 %s20, %s27
    %p29 = scmp.eq.s32.totalorder %s28, 0
    %s31 = sadd.s32 %s30, 1
    %s32 = scalar_select %p29, %s30, %s31
    %p35 = pneg %p29
    %p36 = scmp.eq.s32.totalorder %s20, 1
    %p37 = por %p35, %p36
    %p38 = scmp.ne.s32.totalorder %s30, %s33
    %p39 = scmp.eq.s32.totalorder %s20, 0
    %p40 = por %p38, %p39
    %p41 = scmp.ne.s32.totalorder %s30, %s33
    %p42 = scmp.eq.s32.totalorder %s25, 1
    %p43 = por %p41, %p42
    %p44 = scmp.ne.s32.totalorder %s33, %s34
    %p45 = scmp.eq.s32.totalorder %s25, 0
    %p46 = por %p44, %p45
    %p47 = scmp.ne.s32.totalorder %s33, %s34
    %p48 = scmp.eq.s32.totalorder %s26, 1
    %p49 = por %p47, %p48
    %p51 = scmp.ne.s32.totalorder %s34, %s50
    %p52 = scmp.eq.s32.totalorder %s26, 0
    %p53 = por %p51, %p52
    %s54 = ssub.s32 %s20, %s27
    %p55 = scmp.eq.s32.totalorder %s54, 0
    %s57 = sadd.s32 %s56, 1
    %s58 = scalar_select %p55, %s56, %s57
    %p61 = pneg %p55
    %p62 = scmp.eq.s32.totalorder %s20, 1
    %p63 = por %p61, %p62
    %p64 = scmp.ne.s32.totalorder %s56, %s59
    %p65 = scmp.eq.s32.totalorder %s20, 0
    %p66 = por %p64, %p65
    %p67 = scmp.ne.s32.totalorder %s56, %s59
    %p68 = scmp.eq.s32.totalorder %s25, 1
    %p69 = por %p67, %p68
    %p70 = scmp.ne.s32.totalorder %s59, %s60
    %p71 = scmp.eq.s32.totalorder %s25, 0
    %p72 = por %p70, %p71
    %p73 = scmp.ne.s32.totalorder %s59, %s60
    %p74 = scmp.eq.s32.totalorder %s26, 1
    %p75 = por %p73, %p74
    %p77 = scmp.ne.s32.totalorder %s60, %s76
    %p78 = scmp.eq.s32.totalorder %s26, 0
    %p79 = por %p77, %p78
    %s80 = ssub.s32 %s20, %s27
    %p81 = scmp.eq.s32.totalorder %s80, 0
    %s83 = sadd.s32 %s82, 1
    %s84 = scalar_select %p81, %s82, %s83
    %p87 = pneg %p81
    %p88 = scmp.eq.s32.totalorder %s20, 1
    %p89 = por %p87, %p88
    %p90 = scmp.ne.s32.totalorder %s82, %s85
    %p91 = scmp.eq.s32.totalorder %s20, 0
    %p92 = por %p90, %p91
    %p93 = scmp.ne.s32.totalorder %s82, %s85
    %p94 = scmp.eq.s32.totalorder %s25, 1
    %p95 = por %p93, %p94
    %p96 = scmp.ne.s32.totalorder %s85, %s86
    %p97 = scmp.eq.s32.totalorder %s25, 0
    %p98 = por %p96, %p97
    %p99 = scmp.ne.s32.totalorder %s85, %s86
    %p100 = scmp.eq.s32.totalorder %s26, 1
    %p101 = por %p99, %p100
    %p103 = scmp.ne.s32.totalorder %s86, %s102
    %p104 = scmp.eq.s32.totalorder %s26, 0
    %p105 = por %p103, %p104
    %s107 = sadd.s32 %s106, 1
    %p110 = scmp.eq.s32.totalorder %s20, 1
    %p111 = scmp.ne.s32.totalorder %s106, %s108
    %p112 = scmp.eq.s32.totalorder %s20, 0
    %p113 = por %p111, %p112
    %p114 = scmp.ne.s32.totalorder %s106, %s108
    %p115 = scmp.eq.s32.totalorder %s25, 1
    %p116 = por %p114, %p115
    %p117 = scmp.ne.s32.totalorder %s108, %s109
    %p118 = scmp.eq.s32.totalorder %s25, 0
    %p119 = por %p117, %p118
    %p120 = scmp.ne.s32.totalorder %s108, %s109
    %p121 = scmp.eq.s32.totalorder %s26, 1
    %p122 = por %p120, %p121
    %p124 = scmp.ne.s32.totalorder %s109, %s123
    %p125 = scmp.eq.s32.totalorder %s26, 0
    %p126 = por %p124, %p125
    %s128 = sadd.s32 %s127, 1
    %p131 = scmp.eq.s32.totalorder %s20, 1
    %p132 = scmp.ne.s32.totalorder %s127, %s129
    %p133 = scmp.eq.s32.totalorder %s20, 0
    %p134 = por %p132, %p133
    %p135 = scmp.ne.s32.totalorder %s127, %s129
    %p136 = scmp.eq.s32.totalorder %s25, 1
    %p137 = por %p135, %p136
    %p138 = scmp.ne.s32.totalorder %s129, %s130
    %p139 = scmp.eq.s32.totalorder %s25, 0
    %p140 = por %p138, %p139
    %p141 = scmp.ne.s32.totalorder %s129, %s130
    %p142 = scmp.eq.s32.totalorder %s26, 1
    %p143 = por %p141, %p142
    %p145 = scmp.ne.s32.totalorder %s130, %s144
    %p146 = scmp.eq.s32.totalorder %s26, 0
    %p147 = por %p145, %p146
    %s149 = sadd.s32 %s148, 1
    %p152 = scmp.eq.s32.totalorder %s20, 1
    %p153 = scmp.ne.s32.totalorder %s148, %s150
    %p154 = scmp.eq.s32.totalorder %s20, 0
    %p155 = por %p153, %p154
    %p156 = scmp.ne.s32.totalorder %s148, %s150
    %p157 = scmp.eq.s32.totalorder %s25, 1
    %p158 = por %p156, %p157
    %p159 = scmp.ne.s32.totalorder %s150, %s151
    %p160 = scmp.eq.s32.totalorder %s25, 0
    %p161 = por %p159, %p160
    %p162 = scmp.ne.s32.totalorder %s150, %s151
    %p163 = scmp.eq.s32.totalorder %s26, 1
    %p164 = por %p162, %p163
    %p166 = scmp.ne.s32.totalorder %s151, %s165
    %p167 = scmp.eq.s32.totalorder %s26, 0
    %p168 = por %p166, %p167
    %s170 = sadd.s32 %s169, 1
    %p173 = scmp.eq.s32.totalorder %s20, 1
    %p174 = scmp.ne.s32.totalorder %s169, %s171
    %p175 = scmp.eq.s32.totalorder %s20, 0
    %p176 = por %p174, %p175
    %p177 = scmp.ne.s32.totalorder %s169, %s171
    %p178 = scmp.eq.s32.totalorder %s25, 1
    %p179 = por %p177, %p178
    %p180 = scmp.ne.s32.totalorder %s171, %s172
    %p181 = scmp.eq.s32.totalorder %s25, 0
    %p182 = por %p180, %p181
    %p183 = scmp.ne.s32.totalorder %s171, %s172
    %p184 = scmp.eq.s32.totalorder %s26, 1
    %p185 = por %p183, %p184
    %p187 = scmp.ne.s32.totalorder %s172, %s186
    %p188 = scmp.eq.s32.totalorder %s26, 0
    %p189 = por %p187, %p188
    %s191 = sadd.s32 %s190, 1
    %p194 = scmp.eq.s32.totalorder %s20, 1
    %p195 = scmp.ne.s32.totalorder %s190, %s192
    %p196 = scmp.eq.s32.totalorder %s20, 0
    %p197 = por %p195, %p196
    %p198 = scmp.ne.s32.totalorder %s190, %s192
    %p199 = scmp.eq.s32.totalorder %s25, 1
    %p200 = por %p198, %p199
    %p201 = scmp.ne.s32.totalorder %s192, %s193
    %p202 = scmp.eq.s32.totalorder %s25, 0
    %p203 = por %p201, %p202
    %p204 = scmp.ne.s32.totalorder %s192, %s193
    %p205 = scmp.eq.s32.totalorder %s26, 1
    %p206 = por %p204, %p205
    %p208 = scmp.ne.s32.totalorder %s193, %s207
    %p209 = scmp.eq.s32.totalorder %s26, 0
    %p210 = por %p208, %p209
    %s212 = sadd.s32 %s211, 1
    %p215 = scmp.eq.s32.totalorder %s20, 1
    %p216 = scmp.ne.s32.totalorder %s211, %s213
    %p217 = scmp.eq.s32.totalorder %s20, 0
    %p218 = por %p216, %p217
    %p219 = scmp.ne.s32.totalorder %s211, %s213
    %p220 = scmp.eq.s32.totalorder %s25, 1
    %p221 = por %p219, %p220
    %p222 = scmp.ne.s32.totalorder %s213, %s214
    %p223 = scmp.eq.s32.totalorder %s25, 0
    %p224 = por %p222, %p223
    %p225 = scmp.ne.s32.totalorder %s213, %s214
    %p226 = scmp.eq.s32.totalorder %s26, 1
    %p227 = por %p225, %p226
    %p229 = scmp.ne.s32.totalorder %s214, %s228
    %p230 = scmp.eq.s32.totalorder %s26, 0
    %p231 = por %p229, %p230
    %s233 = sadd.s32 %s232, 1
    %p236 = scmp.eq.s32.totalorder %s20, 1
    %p237 = scmp.ne.s32.totalorder %s232, %s234
    %p238 = scmp.eq.s32.totalorder %s20, 0
    %p239 = por %p237, %p238
    %p240 = scmp.ne.s32.totalorder %s232, %s234
    %p241 = scmp.eq.s32.totalorder %s25, 1
    %p242 = por %p240, %p241
    %p243 = scmp.ne.s32.totalorder %s234, %s235
    %p244 = scmp.eq.s32.totalorder %s25, 0
    %p245 = por %p243, %p244
    %p246 = scmp.ne.s32.totalorder %s234, %s235
    %p247 = scmp.eq.s32.totalorder %s26, 1
    %p248 = por %p246, %p247
    %p250 = scmp.ne.s32.totalorder %s235, %s249
    %p251 = scmp.eq.s32.totalorder %s26, 0
    %p252 = por %p250, %p251
    %s254 = sadd.s32 %s253, 1
    %p257 = scmp.eq.s32.totalorder %s20, 1
    %p258 = scmp.ne.s32.totalorder %s253, %s255
    %p259 = scmp.eq.s32.totalorder %s20, 0
    %p260 = por %p258, %p259
    %p261 = scmp.ne.s32.totalorder %s253, %s255
    %p262 = scmp.eq.s32.totalorder %s25, 1
    %p263 = por %p261, %p262
    %p264 = scmp.ne.s32.totalorder %s255, %s256
    %p265 = scmp.eq.s32.totalorder %s25, 0
    %p266 = por %p264, %p265
    %p267 = scmp.ne.s32.totalorder %s255, %s256
    %p268 = scmp.eq.s32.totalorder %s26, 1
    %p269 = por %p267, %p268
    %p271 = scmp.ne.s32.totalorder %s256, %s270
    %p272 = scmp.eq.s32.totalorder %s26, 0
    %p273 = por %p271, %p272
    %s275 = sadd.s32 %s274, 1
    %p278 = scmp.eq.s32.totalorder %s20, 1
    %p279 = scmp.ne.s32.totalorder %s274, %s276
    %p280 = scmp.eq.s32.totalorder %s20, 0
    %p281 = por %p279, %p280
    %p282 = scmp.ne.s32.totalorder %s274, %s276
    %p283 = scmp.eq.s32.totalorder %s25, 1
    %p284 = por %p282, %p283
    %p285 = scmp.ne.s32.totalorder %s276, %s277
    %p286 = scmp.eq.s32.totalorder %s25, 0
    %p287 = por %p285, %p286
    %p288 = scmp.ne.s32.totalorder %s276, %s277
    %p289 = scmp.eq.s32.totalorder %s26, 1
    %p290 = por %p288, %p289
    %p292 = scmp.ne.s32.totalorder %s277, %s291
    %p293 = scmp.eq.s32.totalorder %s26, 0
    %p294 = por %p292, %p293
    %s296 = sadd.s32 %s295, 1
    %p299 = scmp.eq.s32.totalorder %s20, 1
    %p300 = scmp.ne.s32.totalorder %s295, %s297
    %p301 = scmp.eq.s32.totalorder %s20, 0
    %p302 = por %p300, %p301
    %p303 = scmp.ne.s32.totalorder %s295, %s297
    %p304 = scmp.eq.s32.totalorder %s25, 1
    %p305 = por %p303, %p304
    %p306 = scmp.ne.s32.totalorder %s297, %s298
    %p307 = scmp.eq.s32.totalorder %s25, 0
    %p308 = por %p306, %p307
    %p309 = scmp.ne.s32.totalorder %s297, %s298
    %p310 = scmp.eq.s32.totalorder %s26, 1
    %p311 = por %p309, %p310
    %p313 = scmp.ne.s32.totalorder %s298, %s312
    %p314 = scmp.eq.s32.totalorder %s26, 0
    %p315 = por %p313, %p314
    %s317 = sadd.s32 %s316, 1
    %p320 = scmp.eq.s32.totalorder %s20, 1
    %p321 = scmp.ne.s32.totalorder %s316, %s318
    %p322 = scmp.eq.s32.totalorder %s20, 0
    %p323 = por %p321, %p322
    %p324 = scmp.ne.s32.totalorder %s316, %s318
    %p325 = scmp.eq.s32.totalorder %s25, 1
    %p326 = por %p324, %p325
    %p327 = scmp.ne.s32.totalorder %s318, %s319
    %p328 = scmp.eq.s32.totalorder %s25, 0
    %p329 = por %p327, %p328
    %p330 = scmp.ne.s32.totalorder %s318, %s319
    %p331 = scmp.eq.s32.totalorder %s26, 1
    %p332 = por %p330, %p331
    %p334 = scmp.ne.s32.totalorder %s319, %s333
    %p335 = scmp.eq.s32.totalorder %s26, 0
    %p336 = por %p334, %p335
    %s337 = ssub.s32 %s20, %s27
    %p338 = scmp.eq.s32.totalorder %s337, 0
    %s340 = sadd.s32 %s339, 1
    %s341 = scalar_select %p338, %s339, %s340
    %p344 = pneg %p338
    %p345 = scmp.eq.s32.totalorder %s20, 1
    %p346 = por %p344, %p345
    %p347 = scmp.ne.s32.totalorder %s339, %s342
    %p348 = scmp.eq.s32.totalorder %s20, 0
    %p349 = por %p347, %p348
    %p350 = scmp.ne.s32.totalorder %s339, %s342
    %p351 = scmp.eq.s32.totalorder %s25, 1
    %p352 = por %p350, %p351
    %p353 = scmp.ne.s32.totalorder %s342, %s343
    %p354 = scmp.eq.s32.totalorder %s25, 0
    %p355 = por %p353, %p354
    %p356 = scmp.ne.s32.totalorder %s342, %s343
    %p357 = scmp.eq.s32.totalorder %s26, 1
    %p358 = por %p356, %p357
    %p360 = scmp.ne.s32.totalorder %s343, %s359
    %p361 = scmp.eq.s32.totalorder %s26, 0
    %p362 = por %p360, %p361
    %p363 = scmp.le.s32.totalorder 1, %s20
    %p364 = scmp.lt.s32.totalorder %s20, 3
    %p365 = pnand %p363, %p364
    %p366 = pneg %p365
    // Predicated region
    $region9: #{up1_forward.1} parent=5 // pred_check
      _
    $region10: #{up1_forward.1} parent=5 // pred_check_branch
      %368 = sbr.rel (%p365) target = $region12
    $region11: #{up1_forward.1} parent=5 // pred_region
      %s369 = ssub.s32 %s20, 1
      // Predicated region
      $region13: #{up1_forward.1} parent=11 // pred_check
        %p370 = pneg %p119
      $region14: #{up1_forward.1} parent=11 // pred_check_branch
        %372 = sbr.rel (%p370) target = $region16
      $region15: #{up1_forward.1} parent=11 // pred_region
        _
      $region16: #{up1_forward.1} parent=11 // pred_fallthru
        _
      // Predicated region
      $region17: #{up1_forward.1} parent=11 // pred_check
        %p373 = pneg %p140
      $region18: #{up1_forward.1} parent=11 // pred_check_branch
        %375 = sbr.rel (%p373) target = $region20
      $region19: #{up1_forward.1} parent=11 // pred_region
        _
      $region20: #{up1_forward.1} parent=11 // pred_fallthru
        _
      // Predicated region
      $region21: #{up1_forward.1} parent=11 // pred_check
        %p376 = pneg %p161
      $region22: #{up1_forward.1} parent=11 // pred_check_branch
        %378 = sbr.rel (%p376) target = $region24
      $region23: #{up1_forward.1} parent=11 // pred_region
        _
      $region24: #{up1_forward.1} parent=11 // pred_fallthru
        _
      // Predicated region
      $region25: #{up1_forward.1} parent=11 // pred_check
        %p379 = pneg %p182
      $region26: #{up1_forward.1} parent=11 // pred_check_branch
        %381 = sbr.rel (%p379) target = $region28
      $region27: #{up1_forward.1} parent=11 // pred_region
        _
      $region28: #{up1_forward.1} parent=11 // pred_fallthru
        _
      // Predicated region
      $region29: #{up1_forward.1} parent=11 // pred_check
        %p382 = pneg %p203
      $region30: #{up1_forward.1} parent=11 // pred_check_branch
        %384 = sbr.rel (%p382) target = $region32
      $region31: #{up1_forward.1} parent=11 // pred_region
        _
      $region32: #{up1_forward.1} parent=11 // pred_fallthru
        _
      // Predicated region
      $region33: #{up1_forward.1} parent=11 // pred_check
        %p385 = pneg %p224
      $region34: #{up1_forward.1} parent=11 // pred_check_branch
        %387 = sbr.rel (%p385) target = $region36
      $region35: #{up1_forward.1} parent=11 // pred_region
        _
      $region36: #{up1_forward.1} parent=11 // pred_fallthru
        _
      // Predicated region
      $region37: #{up1_forward.1} parent=11 // pred_check
        %p388 = pneg %p245
      $region38: #{up1_forward.1} parent=11 // pred_check_branch
        %390 = sbr.rel (%p388) target = $region40
      $region39: #{up1_forward.1} parent=11 // pred_region
        _
      $region40: #{up1_forward.1} parent=11 // pred_fallthru
        _
      // Predicated region
      $region41: #{up1_forward.1} parent=11 // pred_check
        %p391 = pneg %p266
      $region42: #{up1_forward.1} parent=11 // pred_check_branch
        %393 = sbr.rel (%p391) target = $region44
      $region43: #{up1_forward.1} parent=11 // pred_region
        _
      $region44: #{up1_forward.1} parent=11 // pred_fallthru
        _
      // Predicated region
      $region45: #{up1_forward.1} parent=11 // pred_check
        %p394 = pneg %p287
      $region46: #{up1_forward.1} parent=11 // pred_check_branch
        %396 = sbr.rel (%p394) target = $region48
      $region47: #{up1_forward.1} parent=11 // pred_region
        _
      $region48: #{up1_forward.1} parent=11 // pred_fallthru
        _
      // Predicated region
      $region49: #{up1_forward.1} parent=11 // pred_check
        %p397 = pneg %p308
      $region50: #{up1_forward.1} parent=11 // pred_check_branch
        %399 = sbr.rel (%p397) target = $region52
      $region51: #{up1_forward.1} parent=11 // pred_region
        _
      $region52: #{up1_forward.1} parent=11 // pred_fallthru
        _
      // Predicated region
      $region53: #{up1_forward.1} parent=11 // pred_check
        %p400 = pneg %p329
      $region54: #{up1_forward.1} parent=11 // pred_check_branch
        %402 = sbr.rel (%p400) target = $region56
      $region55: #{up1_forward.1} parent=11 // pred_region
        _
      $region56: #{up1_forward.1} parent=11 // pred_fallthru
        _
    $region12: #{up1_forward.1} parent=5 // pred_fallthru
      _
    %p403 = scmp.lt.s32.totalorder %s20, 2
    // Predicated region
    $region57: #{up1_forward.1} parent=5 // pred_check
      %p404 = pneg %p403
    $region58: #{up1_forward.1} parent=5 // pred_check_branch
      %406 = sbr.rel (%p404) target = $region60
    $region59: #{up1_forward.1} parent=5 // pred_region
      // Predicated region
      $region61: #{up1_forward.1} parent=59 // pred_check
        %p407 = pneg %p40
      $region62: #{up1_forward.1} parent=59 // pred_check_branch
        %409 = sbr.rel (%p407) target = $region64
      $region63: #{up1_forward.1} parent=59 // pred_region
        %p410 = scmp.lt.s32.totalorder %s20, 1
        %s411 = scalar_select %p410, %s20, 1
        %s412 = smul.addr %s411, 8
        %s413 = scalar_lea.vmem %s0, %s412
      $region64: #{up1_forward.1} parent=59 // pred_fallthru
        _
      // Predicated region
      $region65: #{up1_forward.1} parent=59 // pred_check
        %p414 = pneg %p66
      $region66: #{up1_forward.1} parent=59 // pred_check_branch
        %416 = sbr.rel (%p414) target = $region68
      $region67: #{up1_forward.1} parent=59 // pred_region
        %p417 = scmp.lt.s32.totalorder %s20, 1
        %s418 = scalar_select %p417, %s20, 1
        %s419 = smul.addr %s418, 2
        %s420 = smul.addr %s419, 2
        %s421 = scalar_lea.vmem %s1, %s420
      $region68: #{up1_forward.1} parent=59 // pred_fallthru
        _
      // Predicated region
      $region69: #{up1_forward.1} parent=59 // pred_check
        %p422 = pneg %p92
      $region70: #{up1_forward.1} parent=59 // pred_check_branch
        %424 = sbr.rel (%p422) target = $region72
      $region71: #{up1_forward.1} parent=59 // pred_region
        %p425 = scmp.lt.s32.totalorder %s20, 1
        %s426 = scalar_select %p425, %s20, 1
        %s427 = smul.addr %s426, 2
        %s428 = smul.addr %s427, 2
        %s429 = scalar_lea.vmem %s2, %s428
      $region72: #{up1_forward.1} parent=59 // pred_fallthru
        _
    $region60: #{up1_forward.1} parent=5 // pred_fallthru
      _
    %p430 = scmp.le.s32.totalorder 1, %s20
    %p431 = scmp.lt.s32.totalorder %s20, 3
    %p432 = pnand %p430, %p431
    %p433 = pneg %p432
    // Predicated region
    $region73: #{up1_forward.1} parent=5 // pred_check
      _
    $region74: #{up1_forward.1} parent=5 // pred_check_branch
      %435 = sbr.rel (%p432) target = $region76
    $region75: #{up1_forward.1} parent=5 // pred_region
      %s436 = ssub.s32 %s20, 1
      %p437 = scmp.lt.s32.totalorder %s25, 1
      %s438 = scalar_select %p437, %s25, 1
      %s439 = smul.addr %s438, 8
      %s440 = scalar_lea.vmem %s0, %s439
      %p441 = pneg %p46
      %p442 = pneg %p43
      %p443 = scmp.lt.s32.totalorder %s25, 1
      %s444 = scalar_select %p443, %s25, 1
      %s445 = smul.addr %s444, 2
      %s446 = smul.addr %s445, 2
      %s447 = scalar_lea.vmem %s1, %s446
      %p448 = pneg %p72
      %p449 = pneg %p69
      %p450 = scmp.lt.s32.totalorder %s25, 1
      %s451 = scalar_select %p450, %s25, 1
      %s452 = smul.addr %s451, 2
      %s453 = smul.addr %s452, 2
      %s454 = scalar_lea.vmem %s2, %s453
      %p455 = pneg %p98
      %p456 = pneg %p95
      %p457 = pneg %p119
      %p458 = pneg %p116
      %p459 = pneg %p140
      %p460 = pneg %p137
      %p461 = pneg %p161
      %p462 = pneg %p158
      %p463 = pneg %p182
      %p464 = pneg %p179
      %p465 = pneg %p203
      %p466 = pneg %p200
      %p467 = pneg %p224
      %p468 = pneg %p221
      %p469 = pneg %p245
      %p470 = pneg %p242
      %p471 = pneg %p266
      %p472 = pneg %p263
      %p473 = pneg %p287
      %p474 = pneg %p284
      %p475 = pneg %p308
      %p476 = pneg %p305
      %p477 = pneg %p329
      %p478 = pneg %p326
      %p479 = pneg %p355
      %p480 = pneg %p352
      %p481 = scmp.lt.s32.totalorder %s25, 1
      %s482 = scalar_select %p481, %s25, 1
      %s483 = smul.addr %s482, 4
      %s484 = smul.addr %s483, 8
      %s485 = scalar_lea.vmem %s14, %s484
      %p486 = scmp.lt.s32.totalorder %s25, 1
      %s487 = scalar_select %p486, %s25, 1
      %s488 = smul.addr %s487, 8
      %s489 = scalar_lea.vmem %s0, %s488
      %p490 = scmp.lt.s32.totalorder %s25, 1
      %s491 = scalar_select %p490, %s25, 1
      %s492 = smul.addr %s491, 2
      %s493 = smul.addr %s492, 2
      %s494 = scalar_lea.vmem %s1, %s493
      %p495 = scmp.lt.s32.totalorder %s25, 1
      %s496 = scalar_select %p495, %s25, 1
      %s497 = smul.addr %s496, 2
      %s498 = smul.addr %s497, 2
      %s499 = scalar_lea.vmem %s2, %s498
      %p500 = scmp.lt.s32.totalorder %s25, 1
      %s501 = scalar_select %p500, %s25, 1
      %s502 = smul.addr %s501, 4
      %s503 = smul.addr %s502, 8
      %s504 = scalar_lea.vmem %s14, %s503
      %v505 = vld [vmem:[%s489] sm:$0xff]
      %v506 = vld [vmem:[%s494] sm:$0xf]
      %v507 = vld [vmem:[%s499] sm:$0xf]
      %v510 = vunpack.c.l.s4 1983009808
      %v511 = vunpack.c.0.s8 %v510
      %v512 = vlaneseq
      %v513 = vshrl.u32 %v512, 7
      %v514 = vsub.s32 %v511, %v513
      %v515 = vrot.slane %v506, %v514
      %v516 = vcombine.high %v515, %v515
      %v520 = vcombine.low %v507, %v507
      %v522 = vunpack.c.l.s4 1983009808
      %v523 = vunpack.c.0.s8 %v522
      %v524 = vlaneseq
      %v525 = vshrl.u32 %v524, 7
      %v526 = vsub.s32 %v523, %v525
      %v527 = vrot.slane %v520, %v526
      %v528 = vcombine.high %v527, %v527
      %vm531 = vcmask 1041408
      %v532 = vsel %vm531, %v515, %v527
      %v533 = vsel %vm531, %v516, %v528
      %v534 = vld [vmem:[%s3] sm:$0xff]
      %v535 = vld [vmem:[%s3 + $0x8] sm:$0xff]
      %v536 = vld [vmem:[%s3 + $0x10] sm:$0xff]
      %v537 = vld [vmem:[%s3 + $0x18] sm:$0xff]
      %v538 = vld [vmem:[%s3 + $0x20] sm:$0xff]
      %v539 = vld [vmem:[%s3 + $0x28] sm:$0xff]
      %v540 = vld [vmem:[%s3 + $0x30] sm:$0xff]
      %v541 = vld [vmem:[%s3 + $0x38] sm:$0xff]
      %vm542 = vcmask 523264
      %v544 = vsel %vm542, %v505, 0
      %546 = vmatprep.subr.mxu0 0.0
      %547 = vmatpush1.msra.mxu0 0.0
      %548 = vmatprep.subr.mxu0 0.0
      %549 = vmatpush1.msra.mxu0 0.0
      %550 = vmatprep.subr.mxu0 0.0
      %551 = vmatpush1.msra.mxu0 0.0
      %552 = vmatprep.subr.mxu0 0.0
      %553 = vmatpush1.msra.mxu0 0.0
      %554 = vmatprep.subr.mxu0 0.0
      %555 = vmatpush1.msra.mxu0 0.0
      %556 = vmatprep.subr.mxu0 0.0
      %557 = vmatpush1.msra.mxu0 0.0
      %558 = vmatprep.subr.mxu0 0.0
      %559 = vmatpush1.msra.mxu0 0.0
      %560 = vmatprep.subr.mxu0 0.0
      %561 = vmatpush1.msra.mxu0 0.0
      %562 = vmatprep.subr.mxu0 0.0
      %563 = vmatpush1.msra.mxu0 %v541
      %564 = vmatprep.subr.mxu0 0.0
      %565 = vmatpush1.msra.mxu0 %v540
      %566 = vmatprep.subr.mxu0 0.0
      %567 = vmatpush1.msra.mxu0 %v539
      %568 = vmatprep.subr.mxu0 0.0
      %569 = vmatpush1.msra.mxu0 %v538
      %570 = vmatprep.subr.mxu0 0.0
      %571 = vmatpush1.msra.mxu0 %v537
      %572 = vmatprep.subr.mxu0 0.0
      %573 = vmatpush1.msra.mxu0 %v536
      %574 = vmatprep.subr.mxu0 0.0
      %575 = vmatpush1.msra.mxu0 %v535
      %576 = vmatprep.subr.mxu0 0.0
      %577 = vmatpush1.msra.mxu0 %v534
      %578 = vmatprep.subr.mxu0 0.0
      %579 = vmatpush2.msra.mxu0 0.0
      %580 = vmatprep.subr.mxu0 0.0
      %581 = vmatpush2.msra.mxu0 0.0
      %582 = vmatprep.subr.mxu0 0.0
      %583 = vmatpush2.msra.mxu0 0.0
      %584 = vmatprep.subr.mxu0 0.0
      %585 = vmatpush2.msra.mxu0 0.0
      %586 = vmatprep.subr.mxu0 0.0
      %587 = vmatpush2.msra.mxu0 0.0
      %588 = vmatprep.subr.mxu0 0.0
      %589 = vmatpush2.msra.mxu0 0.0
      %590 = vmatprep.subr.mxu0 0.0
      %591 = vmatpush2.msra.mxu0 0.0
      %592 = vmatprep.subr.mxu0 0.0
      %593 = vmatpush2.msra.mxu0 0.0
      %594 = vmatprep.subr.mxu0 0.0
      %595 = vmatpush2.msra.mxu0 0.0
      %596 = vmatprep.subr.mxu0 0.0
      %597 = vmatpush2.msra.mxu0 0.0
      %598 = vmatprep.subr.mxu0 0.0
      %599 = vmatpush2.msra.mxu0 0.0
      %600 = vmatprep.subr.mxu0 0.0
      %601 = vmatpush2.msra.mxu0 0.0
      %602 = vmatprep.subr.mxu0 0.0
      %603 = vmatpush2.msra.mxu0 0.0
      %604 = vmatprep.subr.mxu0 0.0
      %605 = vmatpush2.msra.mxu0 0.0
      %606 = vmatprep.subr.mxu0 0.0
      %607 = vmatpush2.msra.mxu0 0.0
      %608 = vmatprep.subr.mxu0 0.0
      %609 = vmatpush2.msra.mxu0 0.0
      %610 = vmatprep.mubr.f32.mxu0 0.0
      %611 = vmatmul.mubr.f32.gmra.mxu0 %v544
      %v612 = vpop.f32.mrf.mxu0
      %v613 = vadd.f32 0.0, %v612
      %v614 = vpop.f32.mrf.mxu0
      %615 = vdwg.mxu0
      %v616 = vld [vmem:[%s6] sm:$0xf]
      %v617 = vld [vmem:[%s7] sm:$0xf]
      %619 = vset.pattern.permute.xlu0 0
      %620 = vperm.xlu0 %619, %v617
      %v621 = vpop.permute.xlu0 %620
      %vm623 = vcmask 64512
      %v625 = vsel %vm623, %v616, 0
      %627 = vmatprep.subr.mxu0 0.0
      %628 = vmatpush1.msra.mxu0 0.0
      %629 = vmatprep.subr.mxu0 0.0
      %630 = vmatpush1.msra.mxu0 0.0
      %631 = vmatprep.subr.mxu0 0.0
      %632 = vmatpush1.msra.mxu0 0.0
      %633 = vmatprep.subr.mxu0 0.0
      %634 = vmatpush1.msra.mxu0 0.0
      %635 = vmatprep.subr.mxu0 0.0
      %636 = vmatpush1.msra.mxu0 0.0
      %637 = vmatprep.subr.mxu0 0.0
      %638 = vmatpush1.msra.mxu0 0.0
      %639 = vmatprep.subr.mxu0 0.0
      %640 = vmatpush1.msra.mxu0 0.0
      %641 = vmatprep.subr.mxu0 0.0
      %642 = vmatpush1.msra.mxu0 0.0
      %643 = vmatprep.subr.mxu0 0.0
      %644 = vmatpush1.msra.mxu0 0.0
      %645 = vmatprep.subr.mxu0 0.0
      %646 = vmatpush1.msra.mxu0 0.0
      %647 = vmatprep.subr.mxu0 0.0
      %648 = vmatpush1.msra.mxu0 0.0
      %649 = vmatprep.subr.mxu0 0.0
      %650 = vmatpush1.msra.mxu0 0.0
      %651 = vmatprep.subr.mxu0 0.0
      %652 = vmatpush1.msra.mxu0 0.0
      %653 = vmatprep.subr.mxu0 0.0
      %654 = vmatpush1.msra.mxu0 0.0
      %655 = vmatprep.subr.mxu0 0.0
      %656 = vmatpush1.msra.mxu0 0.0
      %657 = vmatprep.subr.mxu0 0.0
      %658 = vmatpush1.msra.mxu0 %v613
      %659 = vmatprep.subr.mxu0 0.0
      %660 = vmatpush2.msra.mxu0 0.0
      %661 = vmatprep.subr.mxu0 0.0
      %662 = vmatpush2.msra.mxu0 0.0
      %663 = vmatprep.subr.mxu0 0.0
      %664 = vmatpush2.msra.mxu0 0.0
      %665 = vmatprep.subr.mxu0 0.0
      %666 = vmatpush2.msra.mxu0 0.0
      %667 = vmatprep.subr.mxu0 0.0
      %668 = vmatpush2.msra.mxu0 0.0
      %669 = vmatprep.subr.mxu0 0.0
      %670 = vmatpush2.msra.mxu0 0.0
      %671 = vmatprep.subr.mxu0 0.0
      %672 = vmatpush2.msra.mxu0 0.0
      %673 = vmatprep.subr.mxu0 0.0
      %674 = vmatpush2.msra.mxu0 0.0
      %675 = vmatprep.subr.mxu0 0.0
      %676 = vmatpush2.msra.mxu0 0.0
      %677 = vmatprep.subr.mxu0 0.0
      %678 = vmatpush2.msra.mxu0 0.0
      %679 = vmatprep.subr.mxu0 0.0
      %680 = vmatpush2.msra.mxu0 0.0
      %681 = vmatprep.subr.mxu0 0.0
      %682 = vmatpush2.msra.mxu0 0.0
      %683 = vmatprep.subr.mxu0 0.0
      %684 = vmatpush2.msra.mxu0 0.0
      %685 = vmatprep.subr.mxu0 0.0
      %686 = vmatpush2.msra.mxu0 0.0
      %687 = vmatprep.subr.mxu0 0.0
      %688 = vmatpush2.msra.mxu0 0.0
      %689 = vmatprep.subr.mxu0 0.0
      %690 = vmatpush2.msra.mxu0 0.0
      %691 = vmatprep.mubr.f32.mxu0 0.0
      %692 = vmatmul.mubr.f32.gmra.mxu0 %v625
      %v693 = vpop.f32.mrf.mxu0
      %v694 = vadd.f32 %v621, %v693
      %v695 = vpop.f32.mrf.mxu0
      %696 = vdwg.mxu0
      %v697 = vmax.f32 %v694, 0.0
      %v698 = vld [vmem:[%s4] sm:$0xff]
      %v699 = vld [vmem:[%s4 + $0x8] sm:$0xff]
      %v700 = vld [vmem:[%s4 + $0x10] sm:$0xff]
      %v701 = vld [vmem:[%s4 + $0x18] sm:$0xff]
      %vm702 = vcmask 130048
      %v704 = vsel %vm702, %v697, 0
      %706 = vmatprep.subr.mxu0 0.0
      %707 = vmatpush1.msra.mxu0 0.0
      %708 = vmatprep.subr.mxu0 0.0
      %709 = vmatpush1.msra.mxu0 0.0
      %710 = vmatprep.subr.mxu0 0.0
      %711 = vmatpush1.msra.mxu0 0.0
      %712 = vmatprep.subr.mxu0 0.0
      %713 = vmatpush1.msra.mxu0 0.0
      %714 = vmatprep.subr.mxu0 0.0
      %715 = vmatpush1.msra.mxu0 0.0
      %716 = vmatprep.subr.mxu0 0.0
      %717 = vmatpush1.msra.mxu0 0.0
      %718 = vmatprep.subr.mxu0 0.0
      %719 = vmatpush1.msra.mxu0 0.0
      %720 = vmatprep.subr.mxu0 0.0
      %721 = vmatpush1.msra.mxu0 0.0
      %722 = vmatprep.subr.mxu0 0.0
      %723 = vmatpush1.msra.mxu0 0.0
      %724 = vmatprep.subr.mxu0 0.0
      %725 = vmatpush1.msra.mxu0 0.0
      %726 = vmatprep.subr.mxu0 0.0
      %727 = vmatpush1.msra.mxu0 0.0
      %728 = vmatprep.subr.mxu0 0.0
      %729 = vmatpush1.msra.mxu0 0.0
      %730 = vmatprep.subr.mxu0 0.0
      %731 = vmatpush1.msra.mxu0 0.0
      %732 = vmatprep.subr.mxu0 0.0
      %733 = vmatpush1.msra.mxu0 0.0
      %734 = vmatprep.subr.mxu0 %v701
      %735 = vmatpush1.msra.mxu0 %v700
      %736 = vmatprep.subr.mxu0 %v699
      %737 = vmatpush1.msra.mxu0 %v698
      %738 = vmatprep.subr.mxu0 0.0
      %739 = vmatpush2.msra.mxu0 0.0
      %740 = vmatprep.subr.mxu0 0.0
      %741 = vmatpush2.msra.mxu0 0.0
      %742 = vmatprep.subr.mxu0 0.0
      %743 = vmatpush2.msra.mxu0 0.0
      %744 = vmatprep.subr.mxu0 0.0
      %745 = vmatpush2.msra.mxu0 0.0
      %746 = vmatprep.subr.mxu0 0.0
      %747 = vmatpush2.msra.mxu0 0.0
      %748 = vmatprep.subr.mxu0 0.0
      %749 = vmatpush2.msra.mxu0 0.0
      %750 = vmatprep.subr.mxu0 0.0
      %751 = vmatpush2.msra.mxu0 0.0
      %752 = vmatprep.subr.mxu0 0.0
      %753 = vmatpush2.msra.mxu0 0.0
      %754 = vmatprep.subr.mxu0 0.0
      %755 = vmatpush2.msra.mxu0 0.0
      %756 = vmatprep.subr.mxu0 0.0
      %757 = vmatpush2.msra.mxu0 0.0
      %758 = vmatprep.subr.mxu0 0.0
      %759 = vmatpush2.msra.mxu0 0.0
      %760 = vmatprep.subr.mxu0 0.0
      %761 = vmatpush2.msra.mxu0 0.0
      %762 = vmatprep.subr.mxu0 0.0
      %763 = vmatpush2.msra.mxu0 0.0
      %764 = vmatprep.subr.mxu0 0.0
      %765 = vmatpush2.msra.mxu0 0.0
      %766 = vmatprep.subr.mxu0 0.0
      %767 = vmatpush2.msra.mxu0 0.0
      %768 = vmatprep.subr.mxu0 0.0
      %769 = vmatpush2.msra.mxu0 0.0
      %770 = vmatprep.mubr.f32.mxu0 0.0
      %771 = vmatmul.mubr.f32.gmra.mxu0 %v704
      %v772 = vpop.f32.mrf.mxu0
      %v773 = vadd.f32 0.0, %v772
      %v774 = vpop.f32.mrf.mxu0
      %v775 = vadd.f32 0.0, %v774
      %776 = vdwg.mxu0
      %v777 = vmul.f32 %v773, %v532
      %v778 = vmul.f32 %v775, %v533
      %v779 = vld [vmem:[%s8] sm:$0xf]
      %v780 = vsel %vm542, %v505, 0.0
      %v781 = vlaneseq
      %v782 = vand.u32 %v781, 127
      %vm783 = vcmp.lt.s32.totalorder %v782, 0
      %v784 = vsub.s32 0, %v782
      %v785 = vsel %vm783, %v784, %v782
      %v786 = vshrl.u32 %v785, 3
      %v787 = vand.u32 %v785, 7
      %v788 = vsub.s32 0, %v787
      %v789 = vsel %vm783, %v788, %v787
      %vm790 = vcmp.ne.s32.totalorder %v789, 0
      %vm791 = vcmp.lt.s32.totalorder %v789, 0
      %vm792 = vmand %vm791, %vm790
      %v793 = vadd.s32 %v789, 8
      %v794 = vsel %vm792, %v793, %v789
      %vm795 = vcmp.ge.s32.totalorder %v794, 1
      %v796 = vsel %vm795, 1, 0
      %v797 = vcvt.s32.f32 %v796
      %vm798 = vcmp.le.s32.totalorder %v794, 6
      %v799 = vsel %vm798, 1, 0
      %v800 = vcvt.s32.f32 %v799
      %802 = vrot.lane.b32.xlu0 %v797, 119
      %v803 = vpop.permute.xlu0 %802
      %v805 = vmul.f32 %v803, 0.0
      %v806 = vmul.f32 %v780, %v803
      %808 = vrot.lane.b32.xlu0 %v800, 121
      %v809 = vpop.permute.xlu0 %808
      %v811 = vmul.f32 %v809, 0.0
      %v812 = vmul.f32 %v780, %v809
      %813 = vrot.lane.b32.xlu0 %v797, 127
      %v814 = vpop.permute.xlu0 %813
      %v816 = vmul.f32 %v814, 0.0
      %v817 = vmul.f32 %v780, %v814
      %818 = vrot.lane.b32.xlu0 %v800, 1
      %v819 = vpop.permute.xlu0 %818
      %v821 = vmul.f32 %v780, %v819
      %822 = vrot.lane.b32.xlu0 %v797, 7
      %v823 = vpop.permute.xlu0 %822
      %v825 = vmul.f32 %v780, %v823
      %826 = vrot.lane.b32.xlu0 %v800, 9
      %v827 = vpop.permute.xlu0 %826
      %v829 = vmul.f32 %v780, %v827
      %832 = vrot.lane.b32.xlu0 0.0, 127
      %v833 = vpop.permute.xlu0 %832
      %834 = vrot.lane.b32.xlu0 %v780, 127
      %v835 = vpop.permute.xlu0 %834
      %vm836 = vcmask 1039360
      %v837 = vsel %vm836, %v833, %v835
      %840 = vrot.lane.b32.xlu0 %v811, 126
      %v841 = vpop.permute.xlu0 %840
      %842 = vrot.lane.b32.xlu0 %v812, 126
      %v843 = vpop.permute.xlu0 %842
      %vm844 = vcmask 1031168
      %v845 = vsel %vm844, %v841, %v843
      %848 = vrot.lane.b32.xlu0 %v816, 120
      %v849 = vpop.permute.xlu0 %848
      %850 = vrot.lane.b32.xlu0 %v817, 120
      %v851 = vpop.permute.xlu0 %850
      %vm852 = vcmask 982016
      %v853 = vsel %vm852, %v849, %v851
      %854 = vrot.lane.b32.xlu0 %v780, 119
      %v855 = vpop.permute.xlu0 %854
      %857 = vrot.lane.b32.xlu0 %v821, 118
      %v858 = vpop.permute.xlu0 %857
      %860 = vrot.lane.b32.xlu0 %v825, 112
      %v861 = vpop.permute.xlu0 %860
      %862 = vrot.lane.b32.xlu0 %v780, 111
      %v863 = vpop.permute.xlu0 %862
      %865 = vrot.lane.b32.xlu0 %v829, 110
      %v866 = vpop.permute.xlu0 %865
      %v867 = vld [vmem:[%s9] sm:$0xf]
      %869 = vset.pattern.permute.xlu0 0
      %870 = vperm.xlu0 %869, %v867
      %v871 = vpop.permute.xlu0 %870
      %875 = vrot.lane.b32.xlu0 %v805, 9
      %v876 = vpop.permute.xlu0 %875
      %877 = vrot.lane.b32.xlu0 %v806, 9
      %v878 = vpop.permute.xlu0 %877
      %879 = vrot.lane.b32.xlu0 %v837, 9
      %v880 = vpop.permute.xlu0 %879
      %881 = vrot.lane.b32.xlu0 %v835, 9
      %v882 = vpop.permute.xlu0 %881
      %883 = vrot.lane.b32.xlu0 %v845, 9
      %v884 = vpop.permute.xlu0 %883
      %885 = vrot.lane.b32.xlu0 %v843, 9
      %v886 = vpop.permute.xlu0 %885
      %887 = vrot.lane.b32.xlu0 %v853, 9
      %v888 = vpop.permute.xlu0 %887
      %889 = vrot.lane.b32.xlu0 %v851, 9
      %v890 = vpop.permute.xlu0 %889
      %891 = vrot.lane.b32.xlu0 %v855, 9
      %v892 = vpop.permute.xlu0 %891
      %893 = vrot.lane.b32.xlu0 %v858, 9
      %v894 = vpop.permute.xlu0 %893
      %895 = vrot.lane.b32.xlu0 %v861, 9
      %v896 = vpop.permute.xlu0 %895
      %897 = vrot.lane.b32.xlu0 %v863, 9
      %v898 = vpop.permute.xlu0 %897
      %899 = vrot.lane.b32.xlu0 %v866, 9
      %v900 = vpop.permute.xlu0 %899
      %vm901 = vcmask 72704
      %v902 = vsel %vm901, %v876, %v878
      %v903 = vsel %vm901, %v880, %v882
      %v904 = vsel %vm901, %v884, %v886
      %v905 = vsel %vm901, %v888, %v890
      %vm915 = vcmask 588800
      %v917 = vsel %vm915, %v779, 0
      %919 = vmatprep.subr.mxu0 0.0
      %920 = vmatpush1.msra.mxu0 0.0
      %921 = vmatprep.subr.mxu0 0.0
      %922 = vmatpush1.msra.mxu0 0.0
      %923 = vmatprep.subr.mxu0 0.0
      %924 = vmatpush1.msra.mxu0 0.0
      %925 = vmatprep.subr.mxu0 0.0
      %926 = vmatpush1.msra.mxu0 0.0
      %927 = vmatprep.subr.mxu0 0.0
      %928 = vmatpush1.msra.mxu0 0.0
      %929 = vmatprep.subr.mxu0 0.0
      %930 = vmatpush1.msra.mxu0 0.0
      %931 = vmatprep.subr.mxu0 0.0
      %932 = vmatpush1.msra.mxu0 0.0
      %933 = vmatprep.subr.mxu0 0.0
      %934 = vmatpush1.msra.mxu0 %v900
      %935 = vmatprep.subr.mxu0 0.0
      %936 = vmatpush1.msra.mxu0 %v898
      %937 = vmatprep.subr.mxu0 0.0
      %938 = vmatpush1.msra.mxu0 %v896
      %939 = vmatprep.subr.mxu0 0.0
      %940 = vmatpush1.msra.mxu0 %v894
      %941 = vmatprep.subr.mxu0 0.0
      %942 = vmatpush1.msra.mxu0 %v892
      %943 = vmatprep.subr.mxu0 0.0
      %944 = vmatpush1.msra.mxu0 %v905
      %945 = vmatprep.subr.mxu0 0.0
      %946 = vmatpush1.msra.mxu0 %v904
      %947 = vmatprep.subr.mxu0 0.0
      %948 = vmatpush1.msra.mxu0 %v903
      %949 = vmatprep.subr.mxu0 0.0
      %950 = vmatpush1.msra.mxu0 %v902
      %951 = vmatprep.subr.mxu0 0.0
      %952 = vmatpush2.msra.mxu0 0.0
      %953 = vmatprep.subr.mxu0 0.0
      %954 = vmatpush2.msra.mxu0 0.0
      %955 = vmatprep.subr.mxu0 0.0
      %956 = vmatpush2.msra.mxu0 0.0
      %957 = vmatprep.subr.mxu0 0.0
      %958 = vmatpush2.msra.mxu0 0.0
      %959 = vmatprep.subr.mxu0 0.0
      %960 = vmatpush2.msra.mxu0 0.0
      %961 = vmatprep.subr.mxu0 0.0
      %962 = vmatpush2.msra.mxu0 0.0
      %963 = vmatprep.subr.mxu0 0.0
      %964 = vmatpush2.msra.mxu0 0.0
      %965 = vmatprep.subr.mxu0 0.0
      %966 = vmatpush2.msra.mxu0 0.0
      %967 = vmatprep.subr.mxu0 0.0
      %968 = vmatpush2.msra.mxu0 0.0
      %969 = vmatprep.subr.mxu0 0.0
      %970 = vmatpush2.msra.mxu0 0.0
      %971 = vmatprep.subr.mxu0 0.0
      %972 = vmatpush2.msra.mxu0 0.0
      %973 = vmatprep.subr.mxu0 0.0
      %974 = vmatpush2.msra.mxu0 0.0
      %975 = vmatprep.subr.mxu0 0.0
      %976 = vmatpush2.msra.mxu0 0.0
      %977 = vmatprep.subr.mxu0 0.0
      %978 = vmatpush2.msra.mxu0 0.0
      %979 = vmatprep.subr.mxu0 0.0
      %980 = vmatpush2.msra.mxu0 0.0
      %981 = vmatprep.subr.mxu0 0.0
      %982 = vmatpush2.msra.mxu0 0.0
      %983 = vmatprep.mubr.f32.mxu0 0.0
      %984 = vmatmul.mubr.f32.gmra.mxu0 %v917
      %v985 = vpop.f32.mrf.mxu0
      %v986 = vadd.f32 %v871, %v985
      %v987 = vpop.f32.mrf.mxu0
      %988 = vdwg.mxu0
      %v989 = vld [vmem:[%s5] sm:$0xff]
      %v990 = vld [vmem:[%s5 + $0x8] sm:$0xff]
      %v991 = vld [vmem:[%s5 + $0x10] sm:$0xff]
      %v992 = vld [vmem:[%s5 + $0x18] sm:$0xff]
      %v993 = vld [vmem:[%s5 + $0x20] sm:$0xff]
      %v994 = vld [vmem:[%s5 + $0x28] sm:$0xff]
      %v995 = vld [vmem:[%s5 + $0x30] sm:$0xff]
      %v996 = vld [vmem:[%s5 + $0x38] sm:$0xff]
      %v997 = vld [vmem:[%s5 + $0x40] sm:$0xff]
      %v998 = vld [vmem:[%s5 + $0x48] sm:$0xff]
      %v999 = vld [vmem:[%s5 + $0x50] sm:$0xff]
      %v1000 = vld [vmem:[%s5 + $0x58] sm:$0xff]
      %v1001 = vld [vmem:[%s5 + $0x60] sm:$0xff]
      %v1002 = vld [vmem:[%s5 + $0x68] sm:$0xff]
      %v1003 = vld [vmem:[%s5 + $0x70] sm:$0xff]
      %v1004 = vld [vmem:[%s5 + $0x78] sm:$0xff]
      %v1006 = vsel %vm542, %v986, 0
      %1008 = vmatprep.subr.mxu0 0.0
      %1009 = vmatpush1.msra.mxu0 0.0
      %1010 = vmatprep.subr.mxu0 0.0
      %1011 = vmatpush1.msra.mxu0 0.0
      %1012 = vmatprep.subr.mxu0 0.0
      %1013 = vmatpush1.msra.mxu0 0.0
      %1014 = vmatprep.subr.mxu0 0.0
      %1015 = vmatpush1.msra.mxu0 0.0
      %1016 = vmatprep.subr.mxu0 0.0
      %1017 = vmatpush1.msra.mxu0 0.0
      %1018 = vmatprep.subr.mxu0 0.0
      %1019 = vmatpush1.msra.mxu0 0.0
      %1020 = vmatprep.subr.mxu0 0.0
      %1021 = vmatpush1.msra.mxu0 0.0
      %1022 = vmatprep.subr.mxu0 0.0
      %1023 = vmatpush1.msra.mxu0 0.0
      %1024 = vmatprep.subr.mxu0 %v1004
      %1025 = vmatpush1.msra.mxu0 %v1003
      %1026 = vmatprep.subr.mxu0 %v1002
      %1027 = vmatpush1.msra.mxu0 %v1001
      %1028 = vmatprep.subr.mxu0 %v1000
      %1029 = vmatpush1.msra.mxu0 %v999
      %1030 = vmatprep.subr.mxu0 %v998
      %1031 = vmatpush1.msra.mxu0 %v997
      %1032 = vmatprep.subr.mxu0 %v996
      %1033 = vmatpush1.msra.mxu0 %v995
      %1034 = vmatprep.subr.mxu0 %v994
      %1035 = vmatpush1.msra.mxu0 %v993
      %1036 = vmatprep.subr.mxu0 %v992
      %1037 = vmatpush1.msra.mxu0 %v991
      %1038 = vmatprep.subr.mxu0 %v990
      %1039 = vmatpush1.msra.mxu0 %v989
      %1040 = vmatprep.subr.mxu0 0.0
      %1041 = vmatpush2.msra.mxu0 0.0
      %1042 = vmatprep.subr.mxu0 0.0
      %1043 = vmatpush2.msra.mxu0 0.0
      %1044 = vmatprep.subr.mxu0 0.0
      %1045 = vmatpush2.msra.mxu0 0.0
      %1046 = vmatprep.subr.mxu0 0.0
      %1047 = vmatpush2.msra.mxu0 0.0
      %1048 = vmatprep.subr.mxu0 0.0
      %1049 = vmatpush2.msra.mxu0 0.0
      %1050 = vmatprep.subr.mxu0 0.0
      %1051 = vmatpush2.msra.mxu0 0.0
      %1052 = vmatprep.subr.mxu0 0.0
      %1053 = vmatpush2.msra.mxu0 0.0
      %1054 = vmatprep.subr.mxu0 0.0
      %1055 = vmatpush2.msra.mxu0 0.0
      %1056 = vmatprep.subr.mxu0 0.0
      %1057 = vmatpush2.msra.mxu0 0.0
      %1058 = vmatprep.subr.mxu0 0.0
      %1059 = vmatpush2.msra.mxu0 0.0
      %1060 = vmatprep.subr.mxu0 0.0
      %1061 = vmatpush2.msra.mxu0 0.0
      %1062 = vmatprep.subr.mxu0 0.0
      %1063 = vmatpush2.msra.mxu0 0.0
      %1064 = vmatprep.subr.mxu0 0.0
      %1065 = vmatpush2.msra.mxu0 0.0
      %1066 = vmatprep.subr.mxu0 0.0
      %1067 = vmatpush2.msra.mxu0 0.0
      %1068 = vmatprep.subr.mxu0 0.0
      %1069 = vmatpush2.msra.mxu0 0.0
      %1070 = vmatprep.subr.mxu0 0.0
      %1071 = vmatpush2.msra.mxu0 0.0
      %1072 = vmatprep.mubr.f32.mxu0 0.0
      %1073 = vmatmul.mubr.f32.gmra.mxu0 %v1006
      %v1074 = vpop.f32.mrf.mxu0
      %v1075 = vadd.f32 0.0, %v1074
      %v1076 = vpop.f32.mrf.mxu0
      %v1077 = vadd.f32 0.0, %v1076
      %1078 = vdwg.mxu0
      %v1081 = vrot.slane %v777, 4
      %v1082 = vrot.slane %v778, 4
      %vm1085 = vcmask 1043456
      %v1086 = vsel %vm1085, %v1075, %v1081
      %v1087 = vsel %vm1085, %v1077, %v1082
      %v1088 = vld [vmem:[%s10] sm:$0xff]
      %v1089 = vld [vmem:[%s10 + $0x8] sm:$0xf]
      %v1090 = vadd.s32 %v782, 128
      %vm1091 = vcmp.lt.s32.totalorder %v782, 0
      %v1092 = vsub.s32 0, %v782
      %v1093 = vsel %vm1091, %v1092, %v782
      %v1094 = vshrl.u32 %v1093, 4
      %v1095 = vand.u32 %v1093, 15
      %v1096 = vsub.s32 0, %v1095
      %v1097 = vsel %vm1091, %v1096, %v1095
      %vm1098 = vcmp.lt.s32.totalorder %v1090, 0
      %v1099 = vsub.s32 0, %v1090
      %v1100 = vsel %vm1098, %v1099, %v1090
      %v1101 = vshrl.u32 %v1100, 4
      %v1102 = vand.u32 %v1100, 15
      %v1103 = vsub.s32 0, %v1102
      %v1104 = vsel %vm1098, %v1103, %v1102
      %vm1105 = vcmp.ne.s32.totalorder %v1097, 0
      %vm1106 = vcmp.ne.s32.totalorder %v1104, 0
      %vm1107 = vcmp.lt.s32.totalorder %v1097, 0
      %vm1108 = vcmp.lt.s32.totalorder %v1104, 0
      %vm1109 = vmand %vm1107, %vm1105
      %vm1110 = vmand %vm1108, %vm1106
      %v1111 = vadd.s32 %v1097, 16
      %v1112 = vadd.s32 %v1104, 16
      %v1113 = vsel %vm1109, %v1111, %v1097
      %v1114 = vsel %vm1110, %v1112, %v1104
      %vm1115 = vcmp.ge.s32.totalorder %v1113, 1
      %vm1116 = vcmp.ge.s32.totalorder %v1114, 1
      %v1117 = vsel %vm1115, 1, 0
      %v1118 = vsel %vm1116, 1, 0
      %v1119 = vcvt.s32.f32 %v1117
      %v1120 = vcvt.s32.f32 %v1118
      %vm1121 = vcmp.le.s32.totalorder %v1113, 14
      %vm1122 = vcmp.le.s32.totalorder %v1114, 14
      %v1123 = vsel %vm1121, 1, 0
      %v1124 = vsel %vm1122, 1, 0
      %v1125 = vcvt.s32.f32 %v1123
      %v1126 = vcvt.s32.f32 %v1124
      %1129 = vrot.lane.b32.xlu0 %v1119, 111
      %v1130 = vpop.permute.xlu0 %1129
      %1131 = vrot.lane.b32.xlu0 %v1120, 111
      %v1132 = vpop.permute.xlu0 %1131
      %vm1133 = vcmask 908288
      %v1134 = vsel %vm1133, %v1130, %v1132
      %v1138 = vmul.f32 %v1130, 0.0
      %v1139 = vmul.f32 %v1086, %v1134
      %v1140 = vmul.f32 %v1087, %v1132
      %1143 = vrot.lane.b32.xlu0 %v1125, 113
      %v1144 = vpop.permute.xlu0 %1143
      %1145 = vrot.lane.b32.xlu0 %v1126, 113
      %v1146 = vpop.permute.xlu0 %1145
      %vm1147 = vcmask 924672
      %v1148 = vsel %vm1147, %v1144, %v1146
      %v1152 = vmul.f32 %v1144, 0.0
      %v1153 = vmul.f32 %v1086, %v1148
      %v1154 = vmul.f32 %v1087, %v1146
      %1155 = vrot.lane.b32.xlu0 %v1119, 127
      %v1156 = vpop.permute.xlu0 %1155
      %1157 = vrot.lane.b32.xlu0 %v1120, 127
      %v1158 = vpop.permute.xlu0 %1157
      %v1159 = vsel %vm836, %v1156, %v1158
      %v1163 = vmul.f32 %v1156, 0.0
      %v1164 = vmul.f32 %v1086, %v1159
      %v1165 = vmul.f32 %v1087, %v1158
      %1166 = vrot.lane.b32.xlu0 %v1125, 1
      %v1167 = vpop.permute.xlu0 %1166
      %1168 = vrot.lane.b32.xlu0 %v1126, 1
      %v1169 = vpop.permute.xlu0 %1168
      %vm1170 = vcmask 7168
      %v1171 = vsel %vm1170, %v1167, %v1169
      %v1175 = vmul.f32 %v1086, %v1167
      %v1176 = vmul.f32 %v1087, %v1171
      %v1177 = vmul.f32 %v1169, 0.0
      %1178 = vrot.lane.b32.xlu0 %v1119, 15
      %v1179 = vpop.permute.xlu0 %1178
      %1180 = vrot.lane.b32.xlu0 %v1120, 15
      %v1181 = vpop.permute.xlu0 %1180
      %vm1182 = vcmask 121856
      %v1183 = vsel %vm1182, %v1179, %v1181
      %v1187 = vmul.f32 %v1086, %v1179
      %v1188 = vmul.f32 %v1087, %v1183
      %v1189 = vmul.f32 %v1181, 0.0
      %1190 = vrot.lane.b32.xlu0 %v1125, 17
      %v1191 = vpop.permute.xlu0 %1190
      %1192 = vrot.lane.b32.xlu0 %v1126, 17
      %v1193 = vpop.permute.xlu0 %1192
      %vm1194 = vcmask 138240
      %v1195 = vsel %vm1194, %v1191, %v1193
      %v1199 = vmul.f32 %v1086, %v1191
      %v1200 = vmul.f32 %v1087, %v1195
      %v1201 = vmul.f32 %v1193, 0.0
      %1204 = vrot.lane.b32.xlu0 %v1086, 127
      %v1205 = vpop.permute.xlu0 %1204
      %1206 = vrot.lane.b32.xlu0 %v1087, 127
      %v1207 = vpop.permute.xlu0 %1206
      %v1208 = vsel %vm836, %v833, %v1205
      %v1209 = vsel %vm836, %v1205, %v1207
      %1213 = vrot.lane.b32.xlu0 %v1152, 126
      %v1214 = vpop.permute.xlu0 %1213
      %1215 = vrot.lane.b32.xlu0 %v1153, 126
      %v1216 = vpop.permute.xlu0 %1215
      %1217 = vrot.lane.b32.xlu0 %v1154, 126
      %v1218 = vpop.permute.xlu0 %1217
      %v1219 = vsel %vm844, %v1214, %v1216
      %v1220 = vsel %vm844, %v1216, %v1218
      %1224 = vrot.lane.b32.xlu0 %v1163, 112
      %v1225 = vpop.permute.xlu0 %1224
      %1226 = vrot.lane.b32.xlu0 %v1164, 112
      %v1227 = vpop.permute.xlu0 %1226
      %1228 = vrot.lane.b32.xlu0 %v1165, 112
      %v1229 = vpop.permute.xlu0 %1228
      %vm1230 = vcmask 916480
      %v1231 = vsel %vm1230, %v1225, %v1227
      %v1232 = vsel %vm1230, %v1227, %v1229
      %1233 = vrot.lane.b32.xlu0 %v1086, 111
      %v1234 = vpop.permute.xlu0 %1233
      %1235 = vrot.lane.b32.xlu0 %v1087, 111
      %v1236 = vpop.permute.xlu0 %1235
      %v1237 = vsel %vm1133, %v1234, %v1236
      %1241 = vrot.lane.b32.xlu0 %v1175, 110
      %v1242 = vpop.permute.xlu0 %1241
      %1243 = vrot.lane.b32.xlu0 %v1176, 110
      %v1244 = vpop.permute.xlu0 %1243
      %1245 = vrot.lane.b32.xlu0 %v1177, 110
      %v1246 = vpop.permute.xlu0 %1245
      %vm1247 = vcmask 900096
      %v1248 = vsel %vm1247, %v1242, %v1244
      %v1249 = vsel %vm1247, %v1244, %v1246
      %1253 = vrot.lane.b32.xlu0 %v1187, 96
      %v1254 = vpop.permute.xlu0 %1253
      %1255 = vrot.lane.b32.xlu0 %v1188, 96
      %v1256 = vpop.permute.xlu0 %1255
      %1257 = vrot.lane.b32.xlu0 %v1189, 96
      %v1258 = vpop.permute.xlu0 %1257
      %vm1259 = vcmask 785408
      %v1260 = vsel %vm1259, %v1254, %v1256
      %v1261 = vsel %vm1259, %v1256, %v1258
      %1262 = vrot.lane.b32.xlu0 %v1086, 95
      %v1263 = vpop.permute.xlu0 %1262
      %1264 = vrot.lane.b32.xlu0 %v1087, 95
      %v1265 = vpop.permute.xlu0 %1264
      %1266 = vrot.lane.b32.xlu0 0.0, 95
      %v1267 = vpop.permute.xlu0 %1266
      %vm1268 = vcmask 777216
      %v1269 = vsel %vm1268, %v1263, %v1265
      %v1270 = vsel %vm1268, %v1265, %v1267
      %1274 = vrot.lane.b32.xlu0 %v1199, 94
      %v1275 = vpop.permute.xlu0 %1274
      %1276 = vrot.lane.b32.xlu0 %v1200, 94
      %v1277 = vpop.permute.xlu0 %1276
      %1278 = vrot.lane.b32.xlu0 %v1201, 94
      %v1279 = vpop.permute.xlu0 %1278
      %vm1280 = vcmask 769024
      %v1281 = vsel %vm1280, %v1275, %v1277
      %v1282 = vsel %vm1280, %v1277, %v1279
      %v1283 = vld [vmem:[%s11] sm:$0xff]
      %v1284 = vld [vmem:[%s11 + $0x8] sm:$0xf]
      %1286 = vset.pattern.permute.xlu0 0
      %1287 = vperm.xlu0 %1286, %v1283
      %v1288 = vpop.permute.xlu0 %1287
      %1291 = vset.pattern.permute.xlu0 0
      %1292 = vperm.xlu0 %1291, %v1284
      %v1293 = vpop.permute.xlu0 %1292
      %1298 = vrot.lane.b32.xlu0 %v1138, 17
      %v1299 = vpop.permute.xlu0 %1298
      %1300 = vrot.lane.b32.xlu0 %v1139, 17
      %v1301 = vpop.permute.xlu0 %1300
      %1302 = vrot.lane.b32.xlu0 %v1140, 17
      %v1303 = vpop.permute.xlu0 %1302
      %1304 = vrot.lane.b32.xlu0 %v1208, 17
      %v1305 = vpop.permute.xlu0 %1304
      %1306 = vrot.lane.b32.xlu0 %v1209, 17
      %v1307 = vpop.permute.xlu0 %1306
      %1308 = vrot.lane.b32.xlu0 %v1207, 17
      %v1309 = vpop.permute.xlu0 %1308
      %1310 = vrot.lane.b32.xlu0 %v1219, 17
      %v1311 = vpop.permute.xlu0 %1310
      %1312 = vrot.lane.b32.xlu0 %v1220, 17
      %v1313 = vpop.permute.xlu0 %1312
      %1314 = vrot.lane.b32.xlu0 %v1218, 17
      %v1315 = vpop.permute.xlu0 %1314
      %1316 = vrot.lane.b32.xlu0 %v1231, 17
      %v1317 = vpop.permute.xlu0 %1316
      %1318 = vrot.lane.b32.xlu0 %v1232, 17
      %v1319 = vpop.permute.xlu0 %1318
      %1320 = vrot.lane.b32.xlu0 %v1229, 17
      %v1321 = vpop.permute.xlu0 %1320
      %1322 = vrot.lane.b32.xlu0 %v1234, 17
      %v1323 = vpop.permute.xlu0 %1322
      %1324 = vrot.lane.b32.xlu0 %v1237, 17
      %v1325 = vpop.permute.xlu0 %1324
      %1326 = vrot.lane.b32.xlu0 %v1236, 17
      %v1327 = vpop.permute.xlu0 %1326
      %1328 = vrot.lane.b32.xlu0 %v1242, 17
      %v1329 = vpop.permute.xlu0 %1328
      %1330 = vrot.lane.b32.xlu0 %v1248, 17
      %v1331 = vpop.permute.xlu0 %1330
      %1332 = vrot.lane.b32.xlu0 %v1249, 17
      %v1333 = vpop.permute.xlu0 %1332
      %1334 = vrot.lane.b32.xlu0 %v1254, 17
      %v1335 = vpop.permute.xlu0 %1334
      %1336 = vrot.lane.b32.xlu0 %v1260, 17
      %v1337 = vpop.permute.xlu0 %1336
      %1338 = vrot.lane.b32.xlu0 %v1261, 17
      %v1339 = vpop.permute.xlu0 %1338
      %1340 = vrot.lane.b32.xlu0 %v1263, 17
      %v1341 = vpop.permute.xlu0 %1340
      %1342 = vrot.lane.b32.xlu0 %v1269, 17
      %v1343 = vpop.permute.xlu0 %1342
      %1344 = vrot.lane.b32.xlu0 %v1270, 17
      %v1345 = vpop.permute.xlu0 %1344
      %1346 = vrot.lane.b32.xlu0 %v1275, 17
      %v1347 = vpop.permute.xlu0 %1346
      %1348 = vrot.lane.b32.xlu0 %v1281, 17
      %v1349 = vpop.permute.xlu0 %1348
      %1350 = vrot.lane.b32.xlu0 %v1282, 17
      %v1351 = vpop.permute.xlu0 %1350
      %v1352 = vsel %vm1194, %v1299, %v1301
      %v1353 = vsel %vm1194, %v1301, %v1303
      %v1354 = vsel %vm1194, %v1305, %v1307
      %v1355 = vsel %vm1194, %v1307, %v1309
      %v1356 = vsel %vm1194, %v1311, %v1313
      %v1357 = vsel %vm1194, %v1313, %v1315
      %v1358 = vsel %vm1194, %v1317, %v1319
      %v1359 = vsel %vm1194, %v1319, %v1321
      %v1360 = vsel %vm1194, %v1323, %v1325
      %v1361 = vsel %vm1194, %v1325, %v1327
      %v1362 = vsel %vm1194, %v1329, %v1331
      %v1363 = vsel %vm1194, %v1331, %v1333
      %v1364 = vsel %vm1194, %v1335, %v1337
      %v1365 = vsel %vm1194, %v1337, %v1339
      %v1366 = vsel %vm1194, %v1341, %v1343
      %v1367 = vsel %vm1194, %v1343, %v1345
      %v1368 = vsel %vm1194, %v1347, %v1349
      %v1369 = vsel %vm1194, %v1349, %v1351
      %v1389 = vsel %vm915, %v1088, 0
      %v1392 = vsel %vm915, %v1089, 0
      %1394 = vmatprep.subr.mxu0 0.0
      %1395 = vmatpush1.msra.mxu0 0.0
      %1396 = vmatprep.subr.mxu0 0.0
      %1397 = vmatpush1.msra.mxu0 0.0
      %1398 = vmatprep.subr.mxu0 0.0
      %1399 = vmatpush1.msra.mxu0 0.0
      %1400 = vmatprep.subr.mxu0 0.0
      %1401 = vmatpush1.msra.mxu0 0.0
      %1402 = vmatprep.subr.mxu0 0.0
      %1403 = vmatpush1.msra.mxu0 0.0
      %1404 = vmatprep.subr.mxu0 0.0
      %1405 = vmatpush1.msra.mxu0 0.0
      %1406 = vmatprep.subr.mxu0 0.0
      %1407 = vmatpush1.msra.mxu0 0.0
      %1408 = vmatprep.subr.mxu0 %v1369
      %1409 = vmatpush1.msra.mxu0 %v1368
      %1410 = vmatprep.subr.mxu0 %v1367
      %1411 = vmatpush1.msra.mxu0 %v1366
      %1412 = vmatprep.subr.mxu0 %v1365
      %1413 = vmatpush1.msra.mxu0 %v1364
      %1414 = vmatprep.subr.mxu0 %v1363
      %1415 = vmatpush1.msra.mxu0 %v1362
      %1416 = vmatprep.subr.mxu0 %v1361
      %1417 = vmatpush1.msra.mxu0 %v1360
      %1418 = vmatprep.subr.mxu0 %v1359
      %1419 = vmatpush1.msra.mxu0 %v1358
      %1420 = vmatprep.subr.mxu0 %v1357
      %1421 = vmatpush1.msra.mxu0 %v1356
      %1422 = vmatprep.subr.mxu0 %v1355
      %1423 = vmatpush1.msra.mxu0 %v1354
      %1424 = vmatprep.subr.mxu0 %v1353
      %1425 = vmatpush1.msra.mxu0 %v1352
      %1426 = vmatprep.subr.mxu0 0.0
      %1427 = vmatpush2.msra.mxu0 0.0
      %1428 = vmatprep.subr.mxu0 0.0
      %1429 = vmatpush2.msra.mxu0 0.0
      %1430 = vmatprep.subr.mxu0 0.0
      %1431 = vmatpush2.msra.mxu0 0.0
      %1432 = vmatprep.subr.mxu0 0.0
      %1433 = vmatpush2.msra.mxu0 0.0
      %1434 = vmatprep.subr.mxu0 0.0
      %1435 = vmatpush2.msra.mxu0 0.0
      %1436 = vmatprep.subr.mxu0 0.0
      %1437 = vmatpush2.msra.mxu0 0.0
      %1438 = vmatprep.subr.mxu0 0.0
      %1439 = vmatpush2.msra.mxu0 0.0
      %1440 = vmatprep.subr.mxu0 0.0
      %1441 = vmatpush2.msra.mxu0 0.0
      %1442 = vmatprep.subr.mxu0 0.0
      %1443 = vmatpush2.msra.mxu0 0.0
      %1444 = vmatprep.subr.mxu0 0.0
      %1445 = vmatpush2.msra.mxu0 0.0
      %1446 = vmatprep.subr.mxu0 0.0
      %1447 = vmatpush2.msra.mxu0 0.0
      %1448 = vmatprep.subr.mxu0 0.0
      %1449 = vmatpush2.msra.mxu0 0.0
      %1450 = vmatprep.subr.mxu0 0.0
      %1451 = vmatpush2.msra.mxu0 0.0
      %1452 = vmatprep.subr.mxu0 0.0
      %1453 = vmatpush2.msra.mxu0 0.0
      %1454 = vmatprep.subr.mxu0 0.0
      %1455 = vmatpush2.msra.mxu0 0.0
      %1456 = vmatprep.subr.mxu0 0.0
      %1457 = vmatpush2.msra.mxu0 0.0
      %1458 = vmatprep.mubr.f32.mxu0 0.0
      %1459 = vmatmul.mubr.f32.gmra.mxu0 %v1389
      %v1460 = vpop.f32.mrf.mxu0
      %v1461 = vadd.f32 %v1288, %v1460
      %v1462 = vpop.f32.mrf.mxu0
      %v1463 = vadd.f32 %v1288, %v1462
      %1464 = vmatprep.mubr.f32.mxu0 0.0
      %1465 = vmatmul.mubr.f32.gmra.mxu0 %v1392
      %v1466 = vpop.f32.mrf.mxu0
      %v1467 = vadd.f32 %v1293, %v1466
      %v1468 = vpop.f32.mrf.mxu0
      %v1469 = vadd.f32 %v1293, %v1468
      %1470 = vdwg.mxu0
      %vm1471 = vcmp.gt.f32.partialorder %v1461, 0.0
      %vm1472 = vcmp.gt.f32.partialorder %v1463, 0.0
      %vm1473 = vcmp.gt.f32.partialorder %v1467, 0.0
      %vm1474 = vcmp.gt.f32.partialorder %v1469, 0.0
      %v1475 = vmul.f32 %v1461, 0.01
      %v1476 = vmul.f32 %v1463, 0.01
      %v1477 = vmul.f32 %v1467, 0.01
      %v1478 = vmul.f32 %v1469, 0.01
      %v1479 = vsel %vm1471, %v1461, %v1475
      %v1480 = vsel %vm1472, %v1463, %v1476
      %v1481 = vsel %vm1473, %v1467, %v1477
      %v1482 = vsel %vm1474, %v1469, %v1478
      %v1483 = vld [vmem:[%s12] sm:$0xff]
      %v1484 = vld [vmem:[%s12 + $0x8] sm:$0xf]
      %v1485 = vmul.f32 %v1479, %v1134
      %v1486 = vmul.f32 %v1480, %v1132
      %v1487 = vmul.f32 %v1481, %v1134
      %v1488 = vmul.f32 %v1482, %v1132
      %v1489 = vmul.f32 %v1479, %v1148
      %v1490 = vmul.f32 %v1480, %v1146
      %v1491 = vmul.f32 %v1481, %v1148
      %v1492 = vmul.f32 %v1482, %v1146
      %v1493 = vmul.f32 %v1479, %v1159
      %v1494 = vmul.f32 %v1480, %v1158
      %v1495 = vmul.f32 %v1481, %v1159
      %v1496 = vmul.f32 %v1482, %v1158
      %v1497 = vmul.f32 %v1479, %v1167
      %v1498 = vmul.f32 %v1480, %v1171
      %v1499 = vmul.f32 %v1481, %v1167
      %v1500 = vmul.f32 %v1482, %v1171
      %v1501 = vmul.f32 %v1479, %v1179
      %v1502 = vmul.f32 %v1480, %v1183
      %v1503 = vmul.f32 %v1481, %v1179
      %v1504 = vmul.f32 %v1482, %v1183
      %v1505 = vmul.f32 %v1479, %v1191
      %v1506 = vmul.f32 %v1480, %v1195
      %v1507 = vmul.f32 %v1481, %v1191
      %v1508 = vmul.f32 %v1482, %v1195
      %v1513 = vrot.slane 0.0, 4
      %v1514 = vrot.slane %v1479, 4
      %v1515 = vrot.slane %v1480, 4
      %v1516 = vsel %vm1085, %v1513, %v1513
      %v1517 = vrot.slane %v1481, 4
      %v1518 = vsel %vm1085, %v1514, %v1517
      %v1519 = vrot.slane %v1482, 4
      %v1520 = vsel %vm1085, %v1515, %v1519
      %1521 = vrot.lane.b32.xlu0 %v1513, 127
      %v1522 = vpop.permute.xlu0 %1521
      %1523 = vrot.lane.b32.xlu0 %v1514, 127
      %v1524 = vpop.permute.xlu0 %1523
      %1525 = vrot.lane.b32.xlu0 %v1515, 127
      %v1526 = vpop.permute.xlu0 %1525
      %1527 = vrot.lane.b32.xlu0 %v1516, 127
      %v1528 = vpop.permute.xlu0 %1527
      %1529 = vrot.lane.b32.xlu0 %v1518, 127
      %v1530 = vpop.permute.xlu0 %1529
      %1531 = vrot.lane.b32.xlu0 %v1520, 127
      %v1532 = vpop.permute.xlu0 %1531
      %v1533 = vsel %vm836, %v1522, %v1524
      %v1534 = vsel %vm836, %v1524, %v1526
      %v1535 = vsel %vm836, %v1528, %v1530
      %v1536 = vsel %vm836, %v1530, %v1532
      %1544 = vrot.lane.b32.xlu0 %v1489, 126
      %v1545 = vpop.permute.xlu0 %1544
      %1546 = vrot.lane.b32.xlu0 %v1490, 126
      %v1547 = vpop.permute.xlu0 %1546
      %1548 = vrot.lane.b32.xlu0 %v1491, 126
      %v1549 = vpop.permute.xlu0 %1548
      %1550 = vrot.lane.b32.xlu0 %v1492, 126
      %v1551 = vpop.permute.xlu0 %1550
      %v1552 = vsel %vm844, %v1214, %v1545
      %v1553 = vsel %vm844, %v1545, %v1547
      %v1554 = vsel %vm844, %v1214, %v1549
      %v1555 = vsel %vm844, %v1549, %v1551
      %v1563 = vrot.slane %v1163, 4
      %v1564 = vrot.slane %v1493, 4
      %v1565 = vrot.slane %v1494, 4
      %v1566 = vsel %vm1085, %v1563, %v1563
      %v1567 = vrot.slane %v1495, 4
      %v1568 = vsel %vm1085, %v1564, %v1567
      %v1569 = vrot.slane %v1496, 4
      %v1570 = vsel %vm1085, %v1565, %v1569
      %1571 = vrot.lane.b32.xlu0 %v1563, 112
      %v1572 = vpop.permute.xlu0 %1571
      %1573 = vrot.lane.b32.xlu0 %v1564, 112
      %v1574 = vpop.permute.xlu0 %1573
      %1575 = vrot.lane.b32.xlu0 %v1565, 112
      %v1576 = vpop.permute.xlu0 %1575
      %1577 = vrot.lane.b32.xlu0 %v1566, 112
      %v1578 = vpop.permute.xlu0 %1577
      %1579 = vrot.lane.b32.xlu0 %v1568, 112
      %v1580 = vpop.permute.xlu0 %1579
      %1581 = vrot.lane.b32.xlu0 %v1570, 112
      %v1582 = vpop.permute.xlu0 %1581
      %v1583 = vsel %vm1230, %v1572, %v1574
      %v1584 = vsel %vm1230, %v1574, %v1576
      %v1585 = vsel %vm1230, %v1578, %v1580
      %v1586 = vsel %vm1230, %v1580, %v1582
      %1590 = vrot.lane.b32.xlu0 %v1479, 111
      %v1591 = vpop.permute.xlu0 %1590
      %1592 = vrot.lane.b32.xlu0 %v1480, 111
      %v1593 = vpop.permute.xlu0 %1592
      %1594 = vrot.lane.b32.xlu0 %v1481, 111
      %v1595 = vpop.permute.xlu0 %1594
      %1596 = vrot.lane.b32.xlu0 %v1482, 111
      %v1597 = vpop.permute.xlu0 %1596
      %v1598 = vsel %vm1133, %v1591, %v1593
      %v1599 = vsel %vm1133, %v1595, %v1597
      %v1607 = vrot.slane %v1497, 4
      %v1608 = vrot.slane %v1498, 4
      %v1609 = vrot.slane %v1177, 4
      %v1610 = vrot.slane %v1499, 4
      %v1611 = vsel %vm1085, %v1607, %v1610
      %v1612 = vrot.slane %v1500, 4
      %v1613 = vsel %vm1085, %v1608, %v1612
      %v1614 = vsel %vm1085, %v1609, %v1609
      %1615 = vrot.lane.b32.xlu0 %v1607, 110
      %v1616 = vpop.permute.xlu0 %1615
      %1617 = vrot.lane.b32.xlu0 %v1608, 110
      %v1618 = vpop.permute.xlu0 %1617
      %1619 = vrot.lane.b32.xlu0 %v1609, 110
      %v1620 = vpop.permute.xlu0 %1619
      %1621 = vrot.lane.b32.xlu0 %v1611, 110
      %v1622 = vpop.permute.xlu0 %1621
      %1623 = vrot.lane.b32.xlu0 %v1613, 110
      %v1624 = vpop.permute.xlu0 %1623
      %1625 = vrot.lane.b32.xlu0 %v1614, 110
      %v1626 = vpop.permute.xlu0 %1625
      %v1627 = vsel %vm1247, %v1616, %v1618
      %v1628 = vsel %vm1247, %v1618, %v1620
      %v1629 = vsel %vm1247, %v1622, %v1624
      %v1630 = vsel %vm1247, %v1624, %v1626
      %1638 = vrot.lane.b32.xlu0 %v1501, 96
      %v1639 = vpop.permute.xlu0 %1638
      %1640 = vrot.lane.b32.xlu0 %v1502, 96
      %v1641 = vpop.permute.xlu0 %1640
      %1642 = vrot.lane.b32.xlu0 %v1503, 96
      %v1643 = vpop.permute.xlu0 %1642
      %1644 = vrot.lane.b32.xlu0 %v1504, 96
      %v1645 = vpop.permute.xlu0 %1644
      %v1646 = vsel %vm1259, %v1639, %v1641
      %v1647 = vsel %vm1259, %v1641, %v1258
      %v1648 = vsel %vm1259, %v1643, %v1645
      %v1649 = vsel %vm1259, %v1645, %v1258
      %1653 = vrot.lane.b32.xlu0 %v1514, 95
      %v1654 = vpop.permute.xlu0 %1653
      %1655 = vrot.lane.b32.xlu0 %v1515, 95
      %v1656 = vpop.permute.xlu0 %1655
      %1657 = vrot.lane.b32.xlu0 %v1513, 95
      %v1658 = vpop.permute.xlu0 %1657
      %1659 = vrot.lane.b32.xlu0 %v1518, 95
      %v1660 = vpop.permute.xlu0 %1659
      %1661 = vrot.lane.b32.xlu0 %v1520, 95
      %v1662 = vpop.permute.xlu0 %1661
      %1663 = vrot.lane.b32.xlu0 %v1516, 95
      %v1664 = vpop.permute.xlu0 %1663
      %v1665 = vsel %vm1268, %v1654, %v1656
      %v1666 = vsel %vm1268, %v1656, %v1658
      %v1667 = vsel %vm1268, %v1660, %v1662
      %v1668 = vsel %vm1268, %v1662, %v1664
      %1676 = vrot.lane.b32.xlu0 %v1505, 94
      %v1677 = vpop.permute.xlu0 %1676
      %1678 = vrot.lane.b32.xlu0 %v1506, 94
      %v1679 = vpop.permute.xlu0 %1678
      %1680 = vrot.lane.b32.xlu0 %v1507, 94
      %v1681 = vpop.permute.xlu0 %1680
      %1682 = vrot.lane.b32.xlu0 %v1508, 94
      %v1683 = vpop.permute.xlu0 %1682
      %v1684 = vsel %vm1280, %v1677, %v1679
      %v1685 = vsel %vm1280, %v1679, %v1279
      %v1686 = vsel %vm1280, %v1681, %v1683
      %v1687 = vsel %vm1280, %v1683, %v1279
      %v1688 = vsel %vm1085, %v1138, %v1533
      %v1689 = vsel %vm1085, %v1487, %v1534
      %v1690 = vsel %vm1085, %v1488, %v1526
      %v1691 = vsel %vm1085, %v1554, %v1583
      %v1692 = vsel %vm1085, %v1555, %v1584
      %v1693 = vsel %vm1085, %v1551, %v1576
      %v1694 = vsel %vm1085, %v1595, %v1616
      %v1695 = vsel %vm1085, %v1599, %v1627
      %v1696 = vsel %vm1085, %v1597, %v1628
      %v1697 = vsel %vm1085, %v1643, %v1654
      %v1698 = vsel %vm1085, %v1648, %v1665
      %v1699 = vsel %vm1085, %v1649, %v1666
      %v1700 = vld [vmem:[%s13] sm:$0xff]
      %v1701 = vld [vmem:[%s13 + $0x8] sm:$0xf]
      %1703 = vset.pattern.permute.xlu0 0
      %1704 = vperm.xlu0 %1703, %v1700
      %v1705 = vpop.permute.xlu0 %1704
      %1708 = vset.pattern.permute.xlu0 0
      %1709 = vperm.xlu0 %1708, %v1701
      %v1710 = vpop.permute.xlu0 %1709
      %1726 = vrot.lane.b32.xlu0 %v1485, 17
      %v1727 = vpop.permute.xlu0 %1726
      %1728 = vrot.lane.b32.xlu0 %v1486, 17
      %v1729 = vpop.permute.xlu0 %1728
      %1730 = vrot.lane.b32.xlu0 %v1688, 17
      %v1731 = vpop.permute.xlu0 %1730
      %1732 = vrot.lane.b32.xlu0 %v1689, 17
      %v1733 = vpop.permute.xlu0 %1732
      %1734 = vrot.lane.b32.xlu0 %v1690, 17
      %v1735 = vpop.permute.xlu0 %1734
      %1736 = vrot.lane.b32.xlu0 %v1535, 17
      %v1737 = vpop.permute.xlu0 %1736
      %1738 = vrot.lane.b32.xlu0 %v1536, 17
      %v1739 = vpop.permute.xlu0 %1738
      %1740 = vrot.lane.b32.xlu0 %v1532, 17
      %v1741 = vpop.permute.xlu0 %1740
      %1742 = vrot.lane.b32.xlu0 %v1552, 17
      %v1743 = vpop.permute.xlu0 %1742
      %1744 = vrot.lane.b32.xlu0 %v1553, 17
      %v1745 = vpop.permute.xlu0 %1744
      %1746 = vrot.lane.b32.xlu0 %v1547, 17
      %v1747 = vpop.permute.xlu0 %1746
      %1748 = vrot.lane.b32.xlu0 %v1691, 17
      %v1749 = vpop.permute.xlu0 %1748
      %1750 = vrot.lane.b32.xlu0 %v1692, 17
      %v1751 = vpop.permute.xlu0 %1750
      %1752 = vrot.lane.b32.xlu0 %v1693, 17
      %v1753 = vpop.permute.xlu0 %1752
      %1754 = vrot.lane.b32.xlu0 %v1585, 17
      %v1755 = vpop.permute.xlu0 %1754
      %1756 = vrot.lane.b32.xlu0 %v1586, 17
      %v1757 = vpop.permute.xlu0 %1756
      %1758 = vrot.lane.b32.xlu0 %v1582, 17
      %v1759 = vpop.permute.xlu0 %1758
      %1760 = vrot.lane.b32.xlu0 %v1591, 17
      %v1761 = vpop.permute.xlu0 %1760
      %1762 = vrot.lane.b32.xlu0 %v1598, 17
      %v1763 = vpop.permute.xlu0 %1762
      %1764 = vrot.lane.b32.xlu0 %v1593, 17
      %v1765 = vpop.permute.xlu0 %1764
      %1766 = vrot.lane.b32.xlu0 %v1694, 17
      %v1767 = vpop.permute.xlu0 %1766
      %1768 = vrot.lane.b32.xlu0 %v1695, 17
      %v1769 = vpop.permute.xlu0 %1768
      %1770 = vrot.lane.b32.xlu0 %v1696, 17
      %v1771 = vpop.permute.xlu0 %1770
      %1772 = vrot.lane.b32.xlu0 %v1622, 17
      %v1773 = vpop.permute.xlu0 %1772
      %1774 = vrot.lane.b32.xlu0 %v1629, 17
      %v1775 = vpop.permute.xlu0 %1774
      %1776 = vrot.lane.b32.xlu0 %v1630, 17
      %v1777 = vpop.permute.xlu0 %1776
      %1778 = vrot.lane.b32.xlu0 %v1639, 17
      %v1779 = vpop.permute.xlu0 %1778
      %1780 = vrot.lane.b32.xlu0 %v1646, 17
      %v1781 = vpop.permute.xlu0 %1780
      %1782 = vrot.lane.b32.xlu0 %v1647, 17
      %v1783 = vpop.permute.xlu0 %1782
      %1784 = vrot.lane.b32.xlu0 %v1697, 17
      %v1785 = vpop.permute.xlu0 %1784
      %1786 = vrot.lane.b32.xlu0 %v1698, 17
      %v1787 = vpop.permute.xlu0 %1786
      %1788 = vrot.lane.b32.xlu0 %v1699, 17
      %v1789 = vpop.permute.xlu0 %1788
      %1790 = vrot.lane.b32.xlu0 %v1660, 17
      %v1791 = vpop.permute.xlu0 %1790
      %1792 = vrot.lane.b32.xlu0 %v1667, 17
      %v1793 = vpop.permute.xlu0 %1792
      %1794 = vrot.lane.b32.xlu0 %v1668, 17
      %v1795 = vpop.permute.xlu0 %1794
      %1796 = vrot.lane.b32.xlu0 %v1677, 17
      %v1797 = vpop.permute.xlu0 %1796
      %1798 = vrot.lane.b32.xlu0 %v1684, 17
      %v1799 = vpop.permute.xlu0 %1798
      %1800 = vrot.lane.b32.xlu0 %v1685, 17
      %v1801 = vpop.permute.xlu0 %1800
      %1802 = vrot.lane.b32.xlu0 %v1681, 17
      %v1803 = vpop.permute.xlu0 %1802
      %1804 = vrot.lane.b32.xlu0 %v1686, 17
      %v1805 = vpop.permute.xlu0 %1804
      %1806 = vrot.lane.b32.xlu0 %v1687, 17
      %v1807 = vpop.permute.xlu0 %1806
      %v1808 = vsel %vm1194, %v1299, %v1727
      %v1809 = vsel %vm1194, %v1727, %v1729
      %v1810 = vsel %vm1194, %v1731, %v1733
      %v1811 = vsel %vm1194, %v1733, %v1735
      %v1812 = vsel %vm1194, %v1737, %v1739
      %v1813 = vsel %vm1194, %v1739, %v1741
      %v1814 = vsel %vm1194, %v1743, %v1745
      %v1815 = vsel %vm1194, %v1745, %v1747
      %v1816 = vsel %vm1194, %v1749, %v1751
      %v1817 = vsel %vm1194, %v1751, %v1753
      %v1818 = vsel %vm1194, %v1755, %v1757
      %v1819 = vsel %vm1194, %v1757, %v1759
      %v1820 = vsel %vm1194, %v1761, %v1763
      %v1821 = vsel %vm1194, %v1763, %v1765
      %v1822 = vsel %vm1194, %v1767, %v1769
      %v1823 = vsel %vm1194, %v1769, %v1771
      %v1824 = vsel %vm1194, %v1773, %v1775
      %v1825 = vsel %vm1194, %v1775, %v1777
      %v1826 = vsel %vm1194, %v1779, %v1781
      %v1827 = vsel %vm1194, %v1781, %v1783
      %v1828 = vsel %vm1194, %v1785, %v1787
      %v1829 = vsel %vm1194, %v1787, %v1789
      %v1830 = vsel %vm1194, %v1791, %v1793
      %v1831 = vsel %vm1194, %v1793, %v1795
      %v1832 = vsel %vm1194, %v1797, %v1799
      %v1833 = vsel %vm1194, %v1799, %v1801
      %v1834 = vsel %vm1194, %v1803, %v1805
      %v1835 = vsel %vm1194, %v1805, %v1807
      %vm1862 = vcmask 883712
      %v1864 = vsel %vm1862, %v1483, 0
      %v1867 = vsel %vm1862, %v1484, 0
      %v1869 = vsel %vm1085, %v1834, 0
      %v1871 = vsel %vm1085, %v1835, 0
      %1873 = vmatprep.subr.mxu0 0.0
      %1874 = vmatpush1.msra.mxu0 0.0
      %1875 = vmatprep.subr.mxu0 0.0
      %1876 = vmatpush1.msra.mxu0 0.0
      %1877 = vmatprep.subr.mxu0 %v1871
      %1878 = vmatpush1.msra.mxu0 %v1869
      %1879 = vmatprep.subr.mxu0 %v1833
      %1880 = vmatpush1.msra.mxu0 %v1832
      %1881 = vmatprep.subr.mxu0 %v1831
      %1882 = vmatpush1.msra.mxu0 %v1830
      %1883 = vmatprep.subr.mxu0 %v1829
      %1884 = vmatpush1.msra.mxu0 %v1828
      %1885 = vmatprep.subr.mxu0 %v1827
      %1886 = vmatpush1.msra.mxu0 %v1826
      %1887 = vmatprep.subr.mxu0 %v1825
      %1888 = vmatpush1.msra.mxu0 %v1824
      %1889 = vmatprep.subr.mxu0 %v1823
      %1890 = vmatpush1.msra.mxu0 %v1822
      %1891 = vmatprep.subr.mxu0 %v1821
      %1892 = vmatpush1.msra.mxu0 %v1820
      %1893 = vmatprep.subr.mxu0 %v1819
      %1894 = vmatpush1.msra.mxu0 %v1818
      %1895 = vmatprep.subr.mxu0 %v1817
      %1896 = vmatpush1.msra.mxu0 %v1816
      %1897 = vmatprep.subr.mxu0 %v1815
      %1898 = vmatpush1.msra.mxu0 %v1814
      %1899 = vmatprep.subr.mxu0 %v1813
      %1900 = vmatpush1.msra.mxu0 %v1812
      %1901 = vmatprep.subr.mxu0 %v1811
      %1902 = vmatpush1.msra.mxu0 %v1810
      %1903 = vmatprep.subr.mxu0 %v1809
      %1904 = vmatpush1.msra.mxu0 %v1808
      %1905 = vmatprep.subr.mxu0 0.0
      %1906 = vmatpush2.msra.mxu0 0.0
      %1907 = vmatprep.subr.mxu0 0.0
      %1908 = vmatpush2.msra.mxu0 0.0
      %1909 = vmatprep.subr.mxu0 0.0
      %1910 = vmatpush2.msra.mxu0 0.0
      %1911 = vmatprep.subr.mxu0 0.0
      %1912 = vmatpush2.msra.mxu0 0.0
      %1913 = vmatprep.subr.mxu0 0.0
      %1914 = vmatpush2.msra.mxu0 0.0
      %1915 = vmatprep.subr.mxu0 0.0
      %1916 = vmatpush2.msra.mxu0 0.0
      %1917 = vmatprep.subr.mxu0 0.0
      %1918 = vmatpush2.msra.mxu0 0.0
      %1919 = vmatprep.subr.mxu0 0.0
      %1920 = vmatpush2.msra.mxu0 0.0
      %1921 = vmatprep.subr.mxu0 0.0
      %1922 = vmatpush2.msra.mxu0 0.0
      %1923 = vmatprep.subr.mxu0 0.0
      %1924 = vmatpush2.msra.mxu0 0.0
      %1925 = vmatprep.subr.mxu0 0.0
      %1926 = vmatpush2.msra.mxu0 0.0
      %1927 = vmatprep.subr.mxu0 0.0
      %1928 = vmatpush2.msra.mxu0 0.0
      %1929 = vmatprep.subr.mxu0 0.0
      %1930 = vmatpush2.msra.mxu0 0.0
      %1931 = vmatprep.subr.mxu0 0.0
      %1932 = vmatpush2.msra.mxu0 0.0
      %1933 = vmatprep.subr.mxu0 0.0
      %1934 = vmatpush2.msra.mxu0 0.0
      %1935 = vmatprep.subr.mxu0 0.0
      %1936 = vmatpush2.msra.mxu0 0.0
      %1937 = vmatprep.mubr.f32.mxu0 0.0
      %1938 = vmatmul.mubr.f32.gmra.mxu0 %v1864
      %v1939 = vpop.f32.mrf.mxu0
      %v1940 = vadd.f32 %v1705, %v1939
      %v1941 = vpop.f32.mrf.mxu0
      %v1942 = vadd.f32 %v1705, %v1941
      %1943 = vmatprep.mubr.f32.mxu0 0.0
      %1944 = vmatmul.mubr.f32.gmra.mxu0 %v1867
      %v1945 = vpop.f32.mrf.mxu0
      %v1946 = vadd.f32 %v1710, %v1945
      %v1947 = vpop.f32.mrf.mxu0
      %v1948 = vadd.f32 %v1710, %v1947
      %1949 = vdwg.mxu0
      %vm1950 = vcmp.gt.f32.partialorder %v1940, 0.0
      %vm1951 = vcmp.gt.f32.partialorder %v1942, 0.0
      %vm1952 = vcmp.gt.f32.partialorder %v1946, 0.0
      %vm1953 = vcmp.gt.f32.partialorder %v1948, 0.0
      %v1954 = vmul.f32 %v1940, 0.01
      %v1955 = vmul.f32 %v1942, 0.01
      %v1956 = vmul.f32 %v1946, 0.01
      %v1957 = vmul.f32 %v1948, 0.01
      %v1958 = vsel %vm1950, %v1940, %v1954
      %v1959 = vsel %vm1951, %v1942, %v1955
      %v1960 = vsel %vm1952, %v1946, %v1956
      %v1961 = vsel %vm1953, %v1948, %v1957
      %1962 = vst [vmem:[%s504] sm:$0xff] %v1958
      %1963 = vst [vmem:[%s504 + $0x8] sm:$0xff] %v1959
      %1964 = vst [vmem:[%s504 + $0x10] sm:$0xf] %v1960
      %1965 = vst [vmem:[%s504 + $0x18] sm:$0xf] %v1961
      %p1966 = scmp.lt.s32.totalorder %s25, 1
      %s1967 = scalar_select %p1966, %s25, 1
      %s1968 = smul.addr %s1967, 4
      %s1969 = smul.addr %s1968, 8
      %s1970 = scalar_lea.vmem %s14, %s1969
      // Predicated region
      $region77: #{up1_forward.1} parent=75 // pred_check
        %p1971 = pneg %p352
      $region78: #{up1_forward.1} parent=75 // pred_check_branch
        %1973 = sbr.rel (%p1971) target = $region80
      $region79: #{up1_forward.1} parent=75 // pred_region
        _
      $region80: #{up1_forward.1} parent=75 // pred_fallthru
        _
    $region76: #{up1_forward.1} parent=5 // pred_fallthru
      _
    %p1974 = scmp.le.s32.totalorder 2, %s20
    // Predicated region
    $region81: #{up1_forward.1} parent=5 // pred_check
      %p1975 = pneg %p1974
    $region82: #{up1_forward.1} parent=5 // pred_check_branch
      %1977 = sbr.rel (%p1975) target = $region84
    $region83: #{up1_forward.1} parent=5 // pred_region
      %s1978 = ssub.s32 %s20, 2
      // Predicated region
      $region85: #{up1_forward.1} parent=83 // pred_check
        %p1979 = pneg %p358
      $region86: #{up1_forward.1} parent=83 // pred_check_branch
        %1981 = sbr.rel (%p1979) target = $region88
      $region87: #{up1_forward.1} parent=83 // pred_region
        %p1982 = scmp.lt.s32.totalorder %s26, 1
        %s1983 = scalar_select %p1982, %s26, 1
        %s1984 = smul.addr %s1983, 4
        %s1985 = smul.addr %s1984, 8
        %s1986 = scalar_lea.vmem %s14, %s1985
      $region88: #{up1_forward.1} parent=83 // pred_fallthru
        _
    $region84: #{up1_forward.1} parent=5 // pred_fallthru
      _
  $region6: #{up1_forward.1} parent=0 // loop_footer
    %s24 = sadd.s32 1, %s20
  $region7: #{up1_forward.1} parent=0 // loop_footer_branch
    %19 = sbr.rel target = $region3
  $region8: #{up1_forward.1} parent=0 // loop_exit
    _

</llo_original>
